<compile_context>
chip_gen: v5e
topology: v5e:2x2
jax: 0.10.0
libtpu: 0.0.40
codegen_flags: <defaults>
</compile_context>

<pallas_src>
import functools

import jax
import jax.numpy as jnp
from jax import lax
from jax.experimental import pallas as pl
from jax.experimental.pallas import tpu as pltpu


# ----------------------------------------------------------------------------
# Generation-aware VMEM budgets
# ----------------------------------------------------------------------------
def _tpu_vmem_capacity_bytes():
    try:
        return int(pltpu.get_tpu_info().vmem_capacity_bytes)
    except Exception:
        return 64 * 1024 * 1024          # conservative (v7x-sized) fallback


_VMEM_CAP = _tpu_vmem_capacity_bytes()
# <= 48 MiB on v7x (64 MiB physical), up to 96 MiB on v5e/v6e (128 MiB).
_VMEM_LIMIT_BYTES = min((3 * _VMEM_CAP) // 4, 96 * 1024 * 1024)
_TILE_BUDGET = _VMEM_LIMIT_BYTES // 2


def _compiler_params(*semantics):
    return pltpu.CompilerParams(
        dimension_semantics=semantics,
        vmem_limit_bytes=_VMEM_LIMIT_BYTES,
    )


# ----------------------------------------------------------------------------
# Tile-size helpers
# ----------------------------------------------------------------------------
def _conv_tile_bytes(th, wp, cin, cout, pool, itemsize):
    """Rough upper bound on live VMEM for one conv3x3 grid step: double-
    buffered pipeline copies, in-kernel temporaries, f32 accumulator, pool
    scratch, weights.  Lane (last-dim) padding to 128 is accounted for."""
    lane = lambda c: -(-c // 128) * 128
    cin_l, cout_l, k_l = lane(cin), lane(cout), lane(3 * cin)
    w = wp - 2
    n_in = 2 * (th + 2) * wp * cin_l * itemsize            # main + halos, x2 buffers
    n_rows = (th + 2) * wp * cin_l * itemsize               # concatenated halo'd tile
    n_fused = (th + 2) * w * k_l * itemsize                 # kw-fused im2col copy
    n_lhs = th * w * k_l * itemsize                         # one kh LHS slice
    n_acc = th * w * cout_l * 4                             # f32 accumulator
    n_pool = th * w * cout_l * 4 if pool else 0             # pool scratch
    oh = th // 2 if pool else th
    ow = (w // 2 if pool else w) + 2
    n_out = 2 * oh * ow * cout_l * itemsize                 # output, x2 buffers
    n_wb = 2 * (3 * k_l * cout_l * itemsize + 8 * cout_l * 4)
    return n_in + n_rows + n_fused + n_lhs + n_acc + n_pool + n_out + n_wb


def _pick_row_tile(h, tile_bytes_fn, *, step=1, budget=_TILE_BUDGET):
    """Largest divisor of h (multiple of `step`) whose estimated VMEM fits
    `budget`; prefers >= 2 row tiles, and an even tile count (v7x megacore)."""
    cands = [d for d in range(step, h + 1, step) if h % d == 0]
    if not cands:
        return h
    fitting = [d for d in cands if tile_bytes_fn(d) <= budget] or [cands[0]]

    def rank(d):
        nh = h // d
        return (nh >= 2 and nh % 2 == 0, nh >= 2, d)

    return max(fitting, key=rank)


def _pick_m_tile(m, target=2048):
    """Spatial (M) tile for the 1x1 convs: multiple of 8 dividing m."""
    cands = [d for d in range(8, min(m, target) + 1, 8) if m % d == 0]
    if not cands:
        return m
    split = [d for d in cands if m // d >= 2]
    return max(split) if split else max(cands)


# ----------------------------------------------------------------------------
# Pallas kernels
# ----------------------------------------------------------------------------
def _conv3x3_kernel(x_ref, top_ref, bot_ref, w_ref, b_ref, o_ref, *scratch,
                    th, wp, cin, cout, relu, pool, pad_out):
    # x:   (1, th, wp, Cin)   width-padded rows [i*th, i*th+th)
    # top: (1, 1,  wp, Cin)   row i*th-1 (clamped; masked to zero at border)
    # bot: (1, 1,  wp, Cin)   row i*th+th (clamped; masked to zero at border)
    # w:   (3, 3*Cin, Cout)   kh x (kw-major, Cin-minor) x Cout
    w_in = wp - 2
    i = pl.program_id(1)
    last = pl.num_programs(1) - 1
    top = jnp.where(i > 0, top_ref[0], jnp.zeros_like(top_ref[0]))
    bot = jnp.where(i < last, bot_ref[0], jnp.zeros_like(bot_ref[0]))
    rows = jnp.concatenate([top, x_ref[0], bot], axis=0)       # (th+2, wp, Cin)

    acc = jnp.zeros((th * w_in, cout), jnp.float32)
    if cin == 1:
        # conv1a: degenerate K -> 9 broadcast multiply-accumulates on the VPU.
        # TODO(synk): pack the 9 taps into a (th*w, 9) MXU matmul if the
        # required lane relayout is cheap enough on the target generation.
        for kh in range(3):
            for kw in range(3):
                patch = rows[kh:kh + th, kw:kw + w_in, :].reshape(th * w_in, 1)
                acc = acc + (patch.astype(jnp.float32)
                             * w_ref[kh, kw].astype(jnp.float32))
    elif cin % 128 == 0:
        # kw-fused im2col in VMEM: K = 3*Cin fills the MXU contraction depth;
        # 3 matmuls / 3 accumulator RMWs per tile instead of 9.
        fused = jnp.concatenate(
            [rows[:, 0:w_in, :], rows[:, 1:w_in + 1, :], rows[:, 2:w_in + 2, :]],
            axis=-1)                                           # (th+2, w, 3*Cin)
        for kh in range(3):
            lhs = fused[kh:kh + th].reshape(th * w_in, 3 * cin)
            acc = acc + jnp.dot(lhs, w_ref[kh],
                                preferred_element_type=jnp.float32)
    else:
        # Lane-unaligned Cin (64): per-tap matmuls, K = Cin.
        # TODO(synk): fuse kw here too once lane-unaligned concatenation is
        # verified on the deployed Mosaic toolchain.
        for kh in range(3):
            for kw in range(3):
                patch = rows[kh:kh + th, kw:kw + w_in, :].reshape(th * w_in, cin)
                tap_w = w_ref[kh, kw * cin:(kw + 1) * cin, :]
                acc = acc + jnp.dot(patch, tap_w,
                                    preferred_element_type=jnp.float32)

    acc = acc + b_ref[...]               # bias once, after tap accumulation
    if relu:
        acc = jnp.maximum(acc, 0.0)
    y = acc.reshape(th, w_in, cout)

    if pool:                             # fused 2x2 max-pool (stride 2)
        y_scr = scratch[0]
        y_scr[...] = y
        tho, wo = th // 2, w_in // 2
        y = jnp.maximum(
            jnp.maximum(y_scr[pl.ds(0, tho, stride=2), pl.ds(0, wo, stride=2), :],
                        y_scr[pl.ds(0, tho, stride=2), pl.ds(1, wo, stride=2), :]),
            jnp.maximum(y_scr[pl.ds(1, tho, stride=2), pl.ds(0, wo, stride=2), :],
                        y_scr[pl.ds(1, tho, stride=2), pl.ds(1, wo, stride=2), :]))

    wo = y.shape[1]
    if pad_out:
        # Emit 1-column zero margins so the next conv3x3 needs no JAX-side pad.
        zcol = jnp.zeros((y.shape[0], 1, cout), o_ref.dtype)
        o_ref[0, :, pl.ds(0, 1), :] = zcol
        o_ref[0, :, pl.ds(wo + 1, 1), :] = zcol
        o_ref[0, :, pl.ds(1, wo), :] = y.astype(o_ref.dtype)
    else:
        o_ref[0] = y.astype(o_ref.dtype)


def _matmul_bias_kernel(x_ref, w_ref, b_ref, o_ref, *, relu, l2norm):
    # x: (1, tm, Cin), w: (Cin, Cout_p), b: (1, Cout_p), o: (1, tm, Cout_p)
    acc = jnp.dot(x_ref[0], w_ref[...], preferred_element_type=jnp.float32)
    acc = acc + b_ref[...]
    if relu:
        acc = jnp.maximum(acc, 0.0)
    if l2norm:                           # fused descriptor L2 normalization
        ss = jnp.sum(acc * acc, axis=-1, keepdims=True)
        acc = acc * lax.rsqrt(ss)
    o_ref[0] = acc.astype(o_ref.dtype)


# ----------------------------------------------------------------------------
# Wrappers
# ----------------------------------------------------------------------------
def conv3x3(x, w_hwio, b, *, relu=True, pool=False, pad_out=True,
            out_dtype=None, compute_dtype=jnp.bfloat16):
    """3x3 / stride-1 / pad-1 conv on NHWC whose width already carries one zero
    column on each side (shape (N, H, W+2, Cin)).  Optionally fuses a trailing
    2x2 max-pool and re-emits the zero column margins on the output."""
    N, H, Wp, Cin = x.shape
    W = Wp - 2
    Cout = w_hwio.shape[-1]
    out_dtype = compute_dtype if out_dtype is None else out_dtype

    xc = x.astype(compute_dtype)
    w2 = w_hwio.reshape(3, 3 * Cin, Cout).astype(compute_dtype)
    b2 = b.reshape(1, Cout).astype(jnp.float32)

    itemsize = jnp.dtype(compute_dtype).itemsize
    step = 2 if pool else 1
    th = _pick_row_tile(
        H, lambda t: _conv_tile_bytes(t, Wp, Cin, Cout, pool, itemsize),
        step=step)
    nh = H // th
    H_out, W_out = (H // 2, W // 2) if pool else (H, W)
    tho = th // 2 if pool else th
    W_store = W_out + 2 if pad_out else W_out

    kernel = functools.partial(_conv3x3_kernel, th=th, wp=Wp, cin=Cin,
                               cout=Cout, relu=relu, pool=pool, pad_out=pad_out)
    scratch = [pltpu.VMEM((th, W, Cout), jnp.float32)] if pool else []
    return pl.pallas_call(
        kernel,
        out_shape=jax.ShapeDtypeStruct((N, H_out, W_store, Cout), out_dtype),
        grid=(N, nh),
        in_specs=[
            # main row tile
            pl.BlockSpec((1, th, Wp, Cin), lambda n, i: (n, i, 0, 0)),
            # halo rows (block size 1 along H => block idx == row idx), clamped
            pl.BlockSpec((1, 1, Wp, Cin),
                         lambda n, i: (n, jnp.maximum(i * th - 1, 0), 0, 0)),
            pl.BlockSpec((1, 1, Wp, Cin),
                         lambda n, i: (n, jnp.minimum(i * th + th, H - 1), 0, 0)),
            # weights / bias: constant index map -> fetched once, stays resident
            pl.BlockSpec((3, 3 * Cin, Cout), lambda n, i: (0, 0, 0)),
            pl.BlockSpec((1, Cout), lambda n, i: (0, 0)),
        ],
        out_specs=pl.BlockSpec((1, tho, W_store, Cout),
                               lambda n, i: (n, i, 0, 0)),
        scratch_shapes=scratch,
        compiler_params=_compiler_params("parallel", "parallel"),
    )(xc, xc, xc, w2, b2)


def conv1x1(x_flat, w_io, b, *, relu=False, l2norm=False, out_dtype=None,
            compute_dtype=jnp.bfloat16, channel_block=0, cin=None):
    """1x1 conv as a tiled matmul on (N, M, Ctot).  `channel_block`/`cin`
    select a channel slice of the input directly via the BlockSpec (no HBM
    slice).  Cout is zero-padded to a multiple of 128 for lane-dense stores;
    the caller un-pads.  Optionally fuses an L2 normalization epilogue."""
    N, M, _ = x_flat.shape
    cin = x_flat.shape[-1] if cin is None else cin
    Cout = w_io.shape[-1]
    out_dtype = compute_dtype if out_dtype is None else out_dtype

    cpad = (-Cout) % 128
    cout_p = Cout + cpad
    w2 = jnp.pad(w_io.astype(compute_dtype), ((0, 0), (0, cpad)))
    b2 = jnp.pad(b.astype(jnp.float32), (0, cpad)).reshape(1, cout_p)

    tm = _pick_m_tile(M)
    xf = x_flat.astype(compute_dtype)
    return pl.pallas_call(
        functools.partial(_matmul_bias_kernel, relu=relu, l2norm=l2norm),
        out_shape=jax.ShapeDtypeStruct((N, M, cout_p), out_dtype),
        grid=(N, M // tm),
        in_specs=[
            pl.BlockSpec((1, tm, cin), lambda n, i: (n, i, channel_block)),
            pl.BlockSpec((cin, cout_p), lambda n, i: (0, 0)),
            pl.BlockSpec((1, cout_p), lambda n, i: (0, 0)),
        ],
        out_specs=pl.BlockSpec((1, tm, cout_p), lambda n, i: (n, i, 0)),
        compiler_params=_compiler_params("parallel", "parallel"),
    )(xf, w2, b2)


# ----------------------------------------------------------------------------
# Parameters (deterministic, synthetic) — shapes follow the PyTorch __init__
# ----------------------------------------------------------------------------
def init_params(key):
    c1, c2, c3, c4, c5, d1 = 64, 64, 128, 128, 256, 256
    shapes = {
        "conv1a": (3, 3, 1, c1), "conv1b": (3, 3, c1, c1),
        "conv2a": (3, 3, c1, c2), "conv2b": (3, 3, c2, c2),
        "conv3a": (3, 3, c2, c3), "conv3b": (3, 3, c3, c3),
        "conv4a": (3, 3, c3, c4), "conv4b": (3, 3, c4, c4),
        "convPa": (3, 3, c4, c5), "convPb": (1, 1, c5, 65),
        "convDa": (3, 3, c4, c5), "convDb": (1, 1, c5, d1),
    }
    params = {}
    for i, (name, shp) in enumerate(sorted(shapes.items())):
        kw, kb = jax.random.split(jax.random.fold_in(key, i))
        fan_in = shp[0] * shp[1] * shp[2]
        w = jax.random.normal(kw, shp, jnp.float32) / jnp.sqrt(float(fan_in))
        b = jax.random.normal(kb, (shp[3],), jnp.float32) * 0.01
        params[name] = (w, b)
    return params


# ----------------------------------------------------------------------------
# Forward pass (Pallas)
# ----------------------------------------------------------------------------
def superpoint_forward(x_nchw, params, compute_dtype=jnp.bfloat16):
    cd = dict(compute_dtype=compute_dtype)
    x = jnp.transpose(x_nchw, (0, 2, 3, 1))                   # NCHW -> NHWC
    # One-time width pad of the 1-channel input image (tiny).  All further
    # conv3x3 layers re-emit their own zero column margins (pad-on-write).
    x = jnp.pad(x, ((0, 0), (0, 0), (1, 1), (0, 0)))

    x = conv3x3(x, *params["conv1a"], relu=True, **cd)
    x = conv3x3(x, *params["conv1b"], relu=True, pool=True, **cd)
    x = conv3x3(x, *params["conv2a"], relu=True, **cd)
    x = conv3x3(x, *params["conv2b"], relu=True, pool=True, **cd)
    x = conv3x3(x, *params["conv3a"], relu=True, **cd)
    x = conv3x3(x, *params["conv3b"], relu=True, pool=True, **cd)
    x = conv3x3(x, *params["conv4a"], relu=True, **cd)
    x = conv3x3(x, *params["conv4b"], relu=True, **cd)

    # convPa + convDa fused along Cout (one read of the conv4b trunk).
    wPa, bPa = params["convPa"]
    wDa, bDa = params["convDa"]
    w_heads = jnp.concatenate([wPa, wDa], axis=-1)            # (3,3,128,512)
    b_heads = jnp.concatenate([bPa, bDa], axis=0)
    heads = conv3x3(x, w_heads, b_heads, relu=True, pad_out=False, **cd)

    N, Ho, Wo, _ = heads.shape
    heads_flat = heads.reshape(N, Ho * Wo, 512)
    c5 = 256

    wPb, bPb = params["convPb"]
    semi_p = conv1x1(heads_flat, wPb.reshape(c5, -1), bPb, relu=False,
                     out_dtype=jnp.float32, channel_block=0, cin=c5, **cd)
    wDb, bDb = params["convDb"]
    desc = conv1x1(heads_flat, wDb.reshape(c5, -1), bDb, relu=False,
                   l2norm=True, out_dtype=jnp.float32, channel_block=1,
                   cin=c5, **cd)

    # convPb's Cout was zero-padded 65 -> 128; fold the un-pad into the
    # final NCHW transpose (single fused copy).
    semi = jnp.transpose(semi_p.reshape(N, Ho, Wo, -1), (0, 3, 1, 2))[:, :65]
    desc = jnp.transpose(desc.reshape(N, Ho, Wo, 256), (0, 3, 1, 2))
    return semi, desc


# ----------------------------------------------------------------------------
# Pure-JAX reference (correctness cross-check)
# ----------------------------------------------------------------------------
def reference_forward(x_nchw, params):
    x = jnp.transpose(x_nchw, (0, 2, 3, 1))

    def conv(x, w, b, relu=True):
        y = lax.conv_general_dilated(
            x, w, (1, 1), "SAME", dimension_numbers=("NHWC", "HWIO", "NHWC"))
        y = y + b
        return jnp.maximum(y, 0.0) if relu else y

    def pool(x):
        return lax.reduce_window(x, -jnp.inf, lax.max,
                                 (1, 2, 2, 1), (1, 2, 2, 1), "VALID")

    x = conv(x, *params["conv1a"]); x = conv(x, *params["conv1b"]); x = pool(x)
    x = conv(x, *params["conv2a"]); x = conv(x, *params["conv2b"]); x = pool(x)
    x = conv(x, *params["conv3a"]); x = conv(x, *params["conv3b"]); x = pool(x)
    x = conv(x, *params["conv4a"]); x = conv(x, *params["conv4b"])
    cPa = conv(x, *params["convPa"])
    semi = conv(cPa, *params["convPb"], relu=False)
    cDa = conv(x, *params["convDa"])
    desc = conv(cDa, *params["convDb"], relu=False)
    dn = jnp.sqrt(jnp.sum(desc * desc, axis=-1, keepdims=True))
    desc = desc / dn
    return (jnp.transpose(semi, (0, 3, 1, 2)),
            jnp.transpose(desc, (0, 3, 1, 2)))


if __name__ == "__main__":
    key = jax.random.PRNGKey(0)
    k_x, k_p = jax.random.split(key)

    # Input follows the module: N x 1 x H x W  (small: 2 x 1 x 16 x 16)
    x = jax.random.normal(k_x, (2, 1, 16, 16), jnp.float32)
    params = init_params(k_p)

    semi_ref, desc_ref = reference_forward(x, params)

    # f32-compute path: tight check of kernel structure / halo & pool fusion.
    semi32, desc32 = superpoint_forward(x, params, compute_dtype=jnp.float32)
    jax.block_until_ready((semi32, desc32))
    assert semi32.shape == (2, 65, 2, 2), semi32.shape
    assert desc32.shape == (2, 256, 2, 2), desc32.shape
    assert jnp.allclose(semi32, semi_ref, atol=1e-3, rtol=1e-3)
    assert jnp.allclose(desc32, desc_ref, atol=1e-3, rtol=1e-3)

    # Default bf16-operand / f32-accumulate path (the performance config).
    semi, desc = superpoint_forward(x, params)
    jax.block_until_ready((semi, desc))
    assert semi.shape == (2, 65, 2, 2), semi.shape
    assert desc.shape == (2, 256, 2, 2), desc.shape
    assert jnp.allclose(semi, semi_ref, atol=1.5e-1, rtol=1e-1)
    assert jnp.allclose(desc, desc_ref, atol=5e-2, rtol=5e-2)

    print("KERNEL_OK")
</pallas_src>

<mosaic_0001>
module attributes {stable_mosaic.version = 11 : i64} {
  func.func @_conv3x3_kernel(%arg0: i32, %arg1: i32, %arg2: memref<1x8x18x1xf32, #tpu.memory_space<vmem>>, %arg3: memref<1x1x18x1xf32, #tpu.memory_space<vmem>>, %arg4: memref<1x1x18x1xf32, #tpu.memory_space<vmem>>, %arg5: memref<3x3x64xf32, #tpu.memory_space<vmem>>, %arg6: memref<1x64xf32, #tpu.memory_space<vmem>>, %arg7: memref<1x8x18x64xf32, #tpu.memory_space<vmem>>) attributes {dimension_semantics = [#tpu.dimension_semantics<parallel>, #tpu.dimension_semantics<parallel>], iteration_bounds = array<i64: 2, 2>, scalar_prefetch = 0 : i64, scratch_operands = 0 : i64, tpu.core_type = #tpu.core_type<tc>, window_params = [{transform_indices = @transform_0, window_bounds = array<i64: 1, 8, 18, 1>}, {transform_indices = @transform_1, window_bounds = array<i64: 1, 1, 18, 1>}, {transform_indices = @transform_2, window_bounds = array<i64: 1, 1, 18, 1>}, {pipeline_mode = #tpu.pipeline_mode<synchronous>, transform_indices = @transform_3, window_bounds = array<i64: 3, 3, 64>}, {pipeline_mode = #tpu.pipeline_mode<synchronous>, transform_indices = @transform_4, window_bounds = array<i64: 1, 64>}, {transform_indices = @transform_5, window_bounds = array<i64: 1, 8, 18, 64>}]} {
    %c0_i32 = arith.constant 0 : i32
    %0 = arith.cmpi sgt, %arg1, %c0_i32 : i32
    %c0 = arith.constant 0 : index
    %c0_0 = arith.constant 0 : index
    %c0_1 = arith.constant 0 : index
    %c0_2 = arith.constant 0 : index
    %1 = vector.load %arg3[%c0, %c0_0, %c0_1, %c0_2] : memref<1x1x18x1xf32, #tpu.memory_space<vmem>>, vector<1x1x18x1xf32>
    %2 = vector.shape_cast %1 : vector<1x1x18x1xf32> to vector<1x18x1xf32>
    %cst = arith.constant 0.000000e+00 : f32
    %3 = vector.broadcast %cst : f32 to vector<1x18x1xf32>
    %4 = arith.select %0, %2, %3 : vector<1x18x1xf32>
    %c1_i32 = arith.constant 1 : i32
    %5 = arith.cmpi slt, %arg1, %c1_i32 : i32
    %c0_3 = arith.constant 0 : index
    %c0_4 = arith.constant 0 : index
    %c0_5 = arith.constant 0 : index
    %c0_6 = arith.constant 0 : index
    %6 = vector.load %arg4[%c0_3, %c0_4, %c0_5, %c0_6] : memref<1x1x18x1xf32, #tpu.memory_space<vmem>>, vector<1x1x18x1xf32>
    %7 = vector.shape_cast %6 : vector<1x1x18x1xf32> to vector<1x18x1xf32>
    %cst_7 = arith.constant 0.000000e+00 : f32
    %8 = vector.broadcast %cst_7 : f32 to vector<1x18x1xf32>
    %9 = arith.select %5, %7, %8 : vector<1x18x1xf32>
    %c0_8 = arith.constant 0 : index
    %c0_9 = arith.constant 0 : index
    %c0_10 = arith.constant 0 : index
    %c0_11 = arith.constant 0 : index
    %10 = vector.load %arg2[%c0_8, %c0_9, %c0_10, %c0_11] : memref<1x8x18x1xf32, #tpu.memory_space<vmem>>, vector<1x8x18x1xf32>
    %11 = vector.shape_cast %10 : vector<1x8x18x1xf32> to vector<8x18x1xf32>
    %12 = tpu.concatenate %4, %11, %9 in 0 : vector<1x18x1xf32>, vector<8x18x1xf32>, vector<1x18x1xf32> -> vector<10x18x1xf32>
    %cst_12 = arith.constant 0.000000e+00 : f32
    %13 = vector.broadcast %cst_12 : f32 to vector<128x64xf32>
    %14 = vector.extract_strided_slice %12 {offsets = [0, 0, 0], sizes = [8, 16, 1], strides = [1, 1, 1]} : vector<10x18x1xf32> to vector<8x16x1xf32>
    %15 = vector.shape_cast %14 : vector<8x16x1xf32> to vector<128x1xf32>
    %c0_13 = arith.constant 0 : index
    %c0_14 = arith.constant 0 : index
    %c0_15 = arith.constant 0 : index
    %16 = vector.load %arg5[%c0_13, %c0_14, %c0_15] : memref<3x3x64xf32, #tpu.memory_space<vmem>>, vector<1x1x64xf32>
    %17 = vector.shape_cast %16 : vector<1x1x64xf32> to vector<64xf32>
    %18 = vector.shape_cast %17 : vector<64xf32> to vector<1x64xf32>
    %19 = vector.broadcast %15 : vector<128x1xf32> to vector<128x64xf32>
    %20 = vector.broadcast %18 : vector<1x64xf32> to vector<128x64xf32>
    %21 = arith.mulf %19, %20 : vector<128x64xf32>
    %22 = arith.addf %13, %21 : vector<128x64xf32>
    %23 = vector.extract_strided_slice %12 {offsets = [0, 1, 0], sizes = [8, 16, 1], strides = [1, 1, 1]} : vector<10x18x1xf32> to vector<8x16x1xf32>
    %24 = vector.shape_cast %23 : vector<8x16x1xf32> to vector<128x1xf32>
    %c0_16 = arith.constant 0 : index
    %c1 = arith.constant 1 : index
    %c0_17 = arith.constant 0 : index
    %25 = vector.load %arg5[%c0_16, %c1, %c0_17] : memref<3x3x64xf32, #tpu.memory_space<vmem>>, vector<1x1x64xf32>
    %26 = vector.shape_cast %25 : vector<1x1x64xf32> to vector<64xf32>
    %27 = vector.shape_cast %26 : vector<64xf32> to vector<1x64xf32>
    %28 = vector.broadcast %24 : vector<128x1xf32> to vector<128x64xf32>
    %29 = vector.broadcast %27 : vector<1x64xf32> to vector<128x64xf32>
    %30 = arith.mulf %28, %29 : vector<128x64xf32>
    %31 = arith.addf %22, %30 : vector<128x64xf32>
    %32 = vector.extract_strided_slice %12 {offsets = [0, 2, 0], sizes = [8, 16, 1], strides = [1, 1, 1]} : vector<10x18x1xf32> to vector<8x16x1xf32>
    %33 = vector.shape_cast %32 : vector<8x16x1xf32> to vector<128x1xf32>
    %c0_18 = arith.constant 0 : index
    %c2 = arith.constant 2 : index
    %c0_19 = arith.constant 0 : index
    %34 = vector.load %arg5[%c0_18, %c2, %c0_19] : memref<3x3x64xf32, #tpu.memory_space<vmem>>, vector<1x1x64xf32>
    %35 = vector.shape_cast %34 : vector<1x1x64xf32> to vector<64xf32>
    %36 = vector.shape_cast %35 : vector<64xf32> to vector<1x64xf32>
    %37 = vector.broadcast %33 : vector<128x1xf32> to vector<128x64xf32>
    %38 = vector.broadcast %36 : vector<1x64xf32> to vector<128x64xf32>
    %39 = arith.mulf %37, %38 : vector<128x64xf32>
    %40 = arith.addf %31, %39 : vector<128x64xf32>
    %41 = vector.extract_strided_slice %12 {offsets = [1, 0, 0], sizes = [8, 16, 1], strides = [1, 1, 1]} : vector<10x18x1xf32> to vector<8x16x1xf32>
    %42 = vector.shape_cast %41 : vector<8x16x1xf32> to vector<128x1xf32>
    %c1_20 = arith.constant 1 : index
    %c0_21 = arith.constant 0 : index
    %c0_22 = arith.constant 0 : index
    %43 = vector.load %arg5[%c1_20, %c0_21, %c0_22] : memref<3x3x64xf32, #tpu.memory_space<vmem>>, vector<1x1x64xf32>
    %44 = vector.shape_cast %43 : vector<1x1x64xf32> to vector<64xf32>
    %45 = vector.shape_cast %44 : vector<64xf32> to vector<1x64xf32>
    %46 = vector.broadcast %42 : vector<128x1xf32> to vector<128x64xf32>
    %47 = vector.broadcast %45 : vector<1x64xf32> to vector<128x64xf32>
    %48 = arith.mulf %46, %47 : vector<128x64xf32>
    %49 = arith.addf %40, %48 : vector<128x64xf32>
    %50 = vector.extract_strided_slice %12 {offsets = [1, 1, 0], sizes = [8, 16, 1], strides = [1, 1, 1]} : vector<10x18x1xf32> to vector<8x16x1xf32>
    %51 = vector.shape_cast %50 : vector<8x16x1xf32> to vector<128x1xf32>
    %c1_23 = arith.constant 1 : index
    %c1_24 = arith.constant 1 : index
    %c0_25 = arith.constant 0 : index
    %52 = vector.load %arg5[%c1_23, %c1_24, %c0_25] : memref<3x3x64xf32, #tpu.memory_space<vmem>>, vector<1x1x64xf32>
    %53 = vector.shape_cast %52 : vector<1x1x64xf32> to vector<64xf32>
    %54 = vector.shape_cast %53 : vector<64xf32> to vector<1x64xf32>
    %55 = vector.broadcast %51 : vector<128x1xf32> to vector<128x64xf32>
    %56 = vector.broadcast %54 : vector<1x64xf32> to vector<128x64xf32>
    %57 = arith.mulf %55, %56 : vector<128x64xf32>
    %58 = arith.addf %49, %57 : vector<128x64xf32>
    %59 = vector.extract_strided_slice %12 {offsets = [1, 2, 0], sizes = [8, 16, 1], strides = [1, 1, 1]} : vector<10x18x1xf32> to vector<8x16x1xf32>
    %60 = vector.shape_cast %59 : vector<8x16x1xf32> to vector<128x1xf32>
    %c1_26 = arith.constant 1 : index
    %c2_27 = arith.constant 2 : index
    %c0_28 = arith.constant 0 : index
    %61 = vector.load %arg5[%c1_26, %c2_27, %c0_28] : memref<3x3x64xf32, #tpu.memory_space<vmem>>, vector<1x1x64xf32>
    %62 = vector.shape_cast %61 : vector<1x1x64xf32> to vector<64xf32>
    %63 = vector.shape_cast %62 : vector<64xf32> to vector<1x64xf32>
    %64 = vector.broadcast %60 : vector<128x1xf32> to vector<128x64xf32>
    %65 = vector.broadcast %63 : vector<1x64xf32> to vector<128x64xf32>
    %66 = arith.mulf %64, %65 : vector<128x64xf32>
    %67 = arith.addf %58, %66 : vector<128x64xf32>
    %68 = vector.extract_strided_slice %12 {offsets = [2, 0, 0], sizes = [8, 16, 1], strides = [1, 1, 1]} : vector<10x18x1xf32> to vector<8x16x1xf32>
    %69 = vector.shape_cast %68 : vector<8x16x1xf32> to vector<128x1xf32>
    %c2_29 = arith.constant 2 : index
    %c0_30 = arith.constant 0 : index
    %c0_31 = arith.constant 0 : index
    %70 = vector.load %arg5[%c2_29, %c0_30, %c0_31] : memref<3x3x64xf32, #tpu.memory_space<vmem>>, vector<1x1x64xf32>
    %71 = vector.shape_cast %70 : vector<1x1x64xf32> to vector<64xf32>
    %72 = vector.shape_cast %71 : vector<64xf32> to vector<1x64xf32>
    %73 = vector.broadcast %69 : vector<128x1xf32> to vector<128x64xf32>
    %74 = vector.broadcast %72 : vector<1x64xf32> to vector<128x64xf32>
    %75 = arith.mulf %73, %74 : vector<128x64xf32>
    %76 = arith.addf %67, %75 : vector<128x64xf32>
    %77 = vector.extract_strided_slice %12 {offsets = [2, 1, 0], sizes = [8, 16, 1], strides = [1, 1, 1]} : vector<10x18x1xf32> to vector<8x16x1xf32>
    %78 = vector.shape_cast %77 : vector<8x16x1xf32> to vector<128x1xf32>
    %c2_32 = arith.constant 2 : index
    %c1_33 = arith.constant 1 : index
    %c0_34 = arith.constant 0 : index
    %79 = vector.load %arg5[%c2_32, %c1_33, %c0_34] : memref<3x3x64xf32, #tpu.memory_space<vmem>>, vector<1x1x64xf32>
    %80 = vector.shape_cast %79 : vector<1x1x64xf32> to vector<64xf32>
    %81 = vector.shape_cast %80 : vector<64xf32> to vector<1x64xf32>
    %82 = vector.broadcast %78 : vector<128x1xf32> to vector<128x64xf32>
    %83 = vector.broadcast %81 : vector<1x64xf32> to vector<128x64xf32>
    %84 = arith.mulf %82, %83 : vector<128x64xf32>
    %85 = arith.addf %76, %84 : vector<128x64xf32>
    %86 = vector.extract_strided_slice %12 {offsets = [2, 2, 0], sizes = [8, 16, 1], strides = [1, 1, 1]} : vector<10x18x1xf32> to vector<8x16x1xf32>
    %87 = vector.shape_cast %86 : vector<8x16x1xf32> to vector<128x1xf32>
    %c2_35 = arith.constant 2 : index
    %c2_36 = arith.constant 2 : index
    %c0_37 = arith.constant 0 : index
    %88 = vector.load %arg5[%c2_35, %c2_36, %c0_37] : memref<3x3x64xf32, #tpu.memory_space<vmem>>, vector<1x1x64xf32>
    %89 = vector.shape_cast %88 : vector<1x1x64xf32> to vector<64xf32>
    %90 = vector.shape_cast %89 : vector<64xf32> to vector<1x64xf32>
    %91 = vector.broadcast %87 : vector<128x1xf32> to vector<128x64xf32>
    %92 = vector.broadcast %90 : vector<1x64xf32> to vector<128x64xf32>
    %93 = arith.mulf %91, %92 : vector<128x64xf32>
    %94 = arith.addf %85, %93 : vector<128x64xf32>
    %c0_38 = arith.constant 0 : index
    %c0_39 = arith.constant 0 : index
    %95 = vector.load %arg6[%c0_38, %c0_39] : memref<1x64xf32, #tpu.memory_space<vmem>>, vector<1x64xf32>
    %96 = vector.broadcast %95 : vector<1x64xf32> to vector<128x64xf32>
    %97 = arith.addf %94, %96 : vector<128x64xf32>
    %cst_40 = arith.constant 0.000000e+00 : f32
    %98 = vector.broadcast %cst_40 : f32 to vector<128x64xf32>
    %99 = arith.maximumf %97, %98 : vector<128x64xf32>
    %100 = vector.shape_cast %99 : vector<128x64xf32> to vector<8x16x64xf32>
    %cst_41 = arith.constant 0.000000e+00 : f32
    %101 = vector.broadcast %cst_41 : f32 to vector<8x1x64xf32>
    %c0_42 = arith.constant 0 : index
    %c0_43 = arith.constant 0 : index
    %c0_44 = arith.constant 0 : index
    %c0_45 = arith.constant 0 : index
    %102 = vector.load %arg7[%c0_42, %c0_43, %c0_44, %c0_45] : memref<1x8x18x64xf32, #tpu.memory_space<vmem>>, vector<1x8x1x64xf32>
    %103 = vector.shape_cast %102 : vector<1x8x1x64xf32> to vector<8x1x64xf32>
    %104 = vector.shape_cast %101 : vector<8x1x64xf32> to vector<1x8x1x64xf32>
    tpu.vector_store %arg7[%c0_42, %c0_43, %c0_44, %c0_45], %104 {strides = array<i32>} : memref<1x8x18x64xf32, #tpu.memory_space<vmem>>, vector<1x8x1x64xf32>,
    %c0_46 = arith.constant 0 : index
    %c0_47 = arith.constant 0 : index
    %c17 = arith.constant 17 : index
    %c0_48 = arith.constant 0 : index
    %105 = vector.load %arg7[%c0_46, %c0_47, %c17, %c0_48] : memref<1x8x18x64xf32, #tpu.memory_space<vmem>>, vector<1x8x1x64xf32>
    %106 = vector.shape_cast %105 : vector<1x8x1x64xf32> to vector<8x1x64xf32>
    %107 = vector.shape_cast %101 : vector<8x1x64xf32> to vector<1x8x1x64xf32>
    tpu.vector_store %arg7[%c0_46, %c0_47, %c17, %c0_48], %107 {strides = array<i32>} : memref<1x8x18x64xf32, #tpu.memory_space<vmem>>, vector<1x8x1x64xf32>,
    %c0_49 = arith.constant 0 : index
    %c0_50 = arith.constant 0 : index
    %c1_51 = arith.constant 1 : index
    %c0_52 = arith.constant 0 : index
    %108 = vector.load %arg7[%c0_49, %c0_50, %c1_51, %c0_52] : memref<1x8x18x64xf32, #tpu.memory_space<vmem>>, vector<1x8x16x64xf32>
    %109 = vector.shape_cast %108 : vector<1x8x16x64xf32> to vector<8x16x64xf32>
    %110 = vector.shape_cast %100 : vector<8x16x64xf32> to vector<1x8x16x64xf32>
    tpu.vector_store %arg7[%c0_49, %c0_50, %c1_51, %c0_52], %110 {strides = array<i32>} : memref<1x8x18x64xf32, #tpu.memory_space<vmem>>, vector<1x8x16x64xf32>,
    return
  }
  func.func @transform_0(%arg0: i32, %arg1: i32) -> (i32, i32, i32, i32) {
    %c0_i32 = arith.constant 0 : i32
    %c0_i32_0 = arith.constant 0 : i32
    %c0_i32_1 = arith.constant 0 : i32
    return %arg0, %arg1, %c0_i32, %c0_i32_0 : i32, i32, i32, i32
  }
  func.func @transform_1(%arg0: i32, %arg1: i32) -> (i32, i32, i32, i32) {
    %c8_i32 = arith.constant 8 : i32
    %0 = arith.muli %arg1, %c8_i32 : i32
    %c1_i32 = arith.constant 1 : i32
    %1 = arith.subi %0, %c1_i32 : i32
    %c0_i32 = arith.constant 0 : i32
    %2 = arith.maxsi %1, %c0_i32 : i32
    %c0_i32_0 = arith.constant 0 : i32
    %c0_i32_1 = arith.constant 0 : i32
    %c0_i32_2 = arith.constant 0 : i32
    return %arg0, %2, %c0_i32_0, %c0_i32_1 : i32, i32, i32, i32
  }
  func.func @transform_2(%arg0: i32, %arg1: i32) -> (i32, i32, i32, i32) {
    %c8_i32 = arith.constant 8 : i32
    %0 = arith.muli %arg1, %c8_i32 : i32
    %c8_i32_0 = arith.constant 8 : i32
    %1 = arith.addi %0, %c8_i32_0 : i32
    %c15_i32 = arith.constant 15 : i32
    %2 = arith.minsi %1, %c15_i32 : i32
    %c0_i32 = arith.constant 0 : i32
    %c0_i32_1 = arith.constant 0 : i32
    %c0_i32_2 = arith.constant 0 : i32
    return %arg0, %2, %c0_i32, %c0_i32_1 : i32, i32, i32, i32
  }
  func.func @transform_3(%arg0: i32, %arg1: i32) -> (i32, i32, i32) {
    %c0_i32 = arith.constant 0 : i32
    %c0_i32_0 = arith.constant 0 : i32
    %c0_i32_1 = arith.constant 0 : i32
    %c0_i32_2 = arith.constant 0 : i32
    return %c0_i32, %c0_i32_0, %c0_i32_1 : i32, i32, i32
  }
  func.func @transform_4(%arg0: i32, %arg1: i32) -> (i32, i32) {
    %c0_i32 = arith.constant 0 : i32
    %c0_i32_0 = arith.constant 0 : i32
    %c0_i32_1 = arith.constant 0 : i32
    return %c0_i32, %c0_i32_0 : i32, i32
  }
  func.func @transform_5(%arg0: i32, %arg1: i32) -> (i32, i32, i32, i32) {
    %c0_i32 = arith.constant 0 : i32
    %c0_i32_0 = arith.constant 0 : i32
    %c0_i32_1 = arith.constant 0 : i32
    return %arg0, %arg1, %c0_i32, %c0_i32_0 : i32, i32, i32, i32
  }
}

</mosaic_0001>

<llo_original>
// kernel: tpu_custom_call.1
$region0: #{tpu_custom_call.1}
  #allocation0 [shape = 'u32[]', space=smem, size = 0x4, offset = 0x4, fixed_abs, tag = 'smem constant byte address 0x4 - core index']
  #allocation1 [shape = 'u32[72,128]{1,0:T(1,128)}', space=vmem, size = 0x9000, scoped, tag = 'internal scratch']
  %s0 = inlined_call_operand.vmem [shape: f32[2,16,18,1], index: 0, kind: input, shape index: {}]
  %s1 = inlined_call_operand.vmem [shape: f32[2,16,18,1], index: 1, kind: input, shape index: {}]
  %s2 = inlined_call_operand.vmem [shape: f32[2,16,18,1], index: 2, kind: input, shape index: {}]
  %s3 = inlined_call_operand.vmem [shape: f32[3,3,64], index: 3, kind: input, shape index: {}]
  %s4 = inlined_call_operand.vmem [shape: f32[1,64], index: 4, kind: input, shape index: {}]
  %s5 = inlined_call_operand.vmem [shape: f32[2,16,18,64], index: 5, kind: output, shape index: {}]
  %s6 = sld [smem:[#allocation0]]
  $region53: #{tpu_custom_call.1} parent=0
    _
  %s8 = ssub.s32 1, %s6
  %s9 = scalar_select 0, %s8, %s6
  loop: start=0, step=1, limit=6
  $region2: #{tpu_custom_call.1} parent=0 // loop_pre_header
    _
  $region3: #{tpu_custom_call.1} parent=0 // loop_header
    %s11 = sphi 0, %s15
    %p12 = scmp.ge.s32.totalorder %s11, 6
    %s18 = sphi 0, %s30
    %s19 = sphi 0, %s26
    %s20 = sphi 0, %s18
    %s21 = sphi 0, %s19
    %s22 = sphi 0, %s20
    %s23 = sphi 0, %s21
    %s35 = sphi 0, %s37
    %s38 = sphi 0, %s35
    %s39 = sphi 0, %s38
    %s55 = sphi 0, %s39
    %s71 = sphi 0, %s73
    %s74 = sphi 0, %s71
    %s75 = sphi 0, %s74
    %s91 = sphi 0, %s75
    %s107 = sphi 0, %s109
    %s110 = sphi 0, %s107
    %s111 = sphi 0, %s110
    %s127 = sphi 0, %s111
    %s131 = sphi 0, %s131
    %s133 = sphi 0, %s131
    %s134 = sphi 0, %s133
    %s148 = sphi 0, %s134
    %s152 = sphi 0, %s152
    %s154 = sphi 0, %s152
    %s155 = sphi 0, %s154
    %s169 = sphi 0, %s155
    %s177 = sphi 0, %s179
    %s180 = sphi 0, %s177
    %s181 = sphi 0, %s180
    %s197 = sphi 0, %s181
  $region4: #{tpu_custom_call.1} parent=0 // loop_header_branch
    %14 = sbr.rel (%p12) target = $region8
  $region5: #{tpu_custom_call.1} parent=0 // loop_body
    %s16 = ssub.s32 %s11, 1
    %s17 = ssub.s32 %s11, 2
    %s24 = sadd.s32 1, %s19
    %p25 = scmp.ge.s32.totalorder %s24, 2
    %s26 = scalar_select %p25, 0, %s24
    %s27 = sadd.s32 1, %s18
    %s28 = scalar_select %p25, %s27, %s18
    %p29 = scmp.ge.s32.totalorder %s28, 2
    %s30 = scalar_select %p29, 0, %s28
    %s31 = ssub.s32 %s18, %s30
    %s32 = ssub.s32 %s19, %s26
    %s33 = sor.u32 %s31, %s32
    %p34 = scmp.eq.s32.totalorder %s33, 0
    %s36 = sadd.s32 %s35, 1
    %s37 = scalar_select %p34, %s35, %s36
    %p40 = pneg %p34
    %p41 = scmp.eq.s32.totalorder %s11, 3
    %p42 = por %p40, %p41
    %p43 = scmp.ne.s32.totalorder %s35, %s38
    %p44 = scmp.eq.s32.totalorder %s11, 0
    %p45 = por %p43, %p44
    %p46 = scmp.ne.s32.totalorder %s35, %s38
    %p47 = scmp.eq.s32.totalorder %s16, 3
    %p48 = por %p46, %p47
    %p49 = scmp.ne.s32.totalorder %s38, %s39
    %p50 = scmp.eq.s32.totalorder %s16, 0
    %p51 = por %p49, %p50
    %p52 = scmp.ne.s32.totalorder %s38, %s39
    %p53 = scmp.eq.s32.totalorder %s17, 3
    %p54 = por %p52, %p53
    %p56 = scmp.ne.s32.totalorder %s39, %s55
    %p57 = scmp.eq.s32.totalorder %s17, 0
    %p58 = por %p56, %p57
    %s59 = smul.u32 %s19, 8
    %s60 = ssub.s32 %s59, 1
    %p61 = scmp.gt.s32.totalorder %s60, 0
    %s62 = scalar_select %p61, %s60, 0
    %s63 = smul.u32 %s26, 8
    %s64 = ssub.s32 %s63, 1
    %p65 = scmp.gt.s32.totalorder %s64, 0
    %s66 = scalar_select %p65, %s64, 0
    %s67 = ssub.s32 %s18, %s30
    %s68 = ssub.s32 %s62, %s66
    %s69 = sor.u32 %s67, %s68
    %p70 = scmp.eq.s32.totalorder %s69, 0
    %s72 = sadd.s32 %s71, 1
    %s73 = scalar_select %p70, %s71, %s72
    %p76 = pneg %p70
    %p77 = scmp.eq.s32.totalorder %s11, 3
    %p78 = por %p76, %p77
    %p79 = scmp.ne.s32.totalorder %s71, %s74
    %p80 = scmp.eq.s32.totalorder %s11, 0
    %p81 = por %p79, %p80
    %p82 = scmp.ne.s32.totalorder %s71, %s74
    %p83 = scmp.eq.s32.totalorder %s16, 3
    %p84 = por %p82, %p83
    %p85 = scmp.ne.s32.totalorder %s74, %s75
    %p86 = scmp.eq.s32.totalorder %s16, 0
    %p87 = por %p85, %p86
    %p88 = scmp.ne.s32.totalorder %s74, %s75
    %p89 = scmp.eq.s32.totalorder %s17, 3
    %p90 = por %p88, %p89
    %p92 = scmp.ne.s32.totalorder %s75, %s91
    %p93 = scmp.eq.s32.totalorder %s17, 0
    %p94 = por %p92, %p93
    %s95 = smul.u32 %s19, 8
    %s96 = sadd.s32 %s95, 8
    %p97 = scmp.lt.s32.totalorder %s96, 15
    %s98 = scalar_select %p97, %s96, 15
    %s99 = smul.u32 %s26, 8
    %s100 = sadd.s32 %s99, 8
    %p101 = scmp.lt.s32.totalorder %s100, 15
    %s102 = scalar_select %p101, %s100, 15
    %s103 = ssub.s32 %s18, %s30
    %s104 = ssub.s32 %s98, %s102
    %s105 = sor.u32 %s103, %s104
    %p106 = scmp.eq.s32.totalorder %s105, 0
    %s108 = sadd.s32 %s107, 1
    %s109 = scalar_select %p106, %s107, %s108
    %p112 = pneg %p106
    %p113 = scmp.eq.s32.totalorder %s11, 3
    %p114 = por %p112, %p113
    %p115 = scmp.ne.s32.totalorder %s107, %s110
    %p116 = scmp.eq.s32.totalorder %s11, 0
    %p117 = por %p115, %p116
    %p118 = scmp.ne.s32.totalorder %s107, %s110
    %p119 = scmp.eq.s32.totalorder %s16, 3
    %p120 = por %p118, %p119
    %p121 = scmp.ne.s32.totalorder %s110, %s111
    %p122 = scmp.eq.s32.totalorder %s16, 0
    %p123 = por %p121, %p122
    %p124 = scmp.ne.s32.totalorder %s110, %s111
    %p125 = scmp.eq.s32.totalorder %s17, 3
    %p126 = por %p124, %p125
    %p128 = scmp.ne.s32.totalorder %s111, %s127
    %p129 = scmp.eq.s32.totalorder %s17, 0
    %p130 = por %p128, %p129
    %s132 = sadd.s32 %s131, 1
    %p135 = scmp.eq.s32.totalorder %s11, 3
    %p136 = scmp.ne.s32.totalorder %s131, %s133
    %p137 = scmp.eq.s32.totalorder %s11, 0
    %p138 = por %p136, %p137
    %p139 = scmp.ne.s32.totalorder %s131, %s133
    %p140 = scmp.eq.s32.totalorder %s16, 3
    %p141 = por %p139, %p140
    %p142 = scmp.ne.s32.totalorder %s133, %s134
    %p143 = scmp.eq.s32.totalorder %s16, 0
    %p144 = por %p142, %p143
    %p145 = scmp.ne.s32.totalorder %s133, %s134
    %p146 = scmp.eq.s32.totalorder %s17, 3
    %p147 = por %p145, %p146
    %p149 = scmp.ne.s32.totalorder %s134, %s148
    %p150 = scmp.eq.s32.totalorder %s17, 0
    %p151 = por %p149, %p150
    %s153 = sadd.s32 %s152, 1
    %p156 = scmp.eq.s32.totalorder %s11, 3
    %p157 = scmp.ne.s32.totalorder %s152, %s154
    %p158 = scmp.eq.s32.totalorder %s11, 0
    %p159 = por %p157, %p158
    %p160 = scmp.ne.s32.totalorder %s152, %s154
    %p161 = scmp.eq.s32.totalorder %s16, 3
    %p162 = por %p160, %p161
    %p163 = scmp.ne.s32.totalorder %s154, %s155
    %p164 = scmp.eq.s32.totalorder %s16, 0
    %p165 = por %p163, %p164
    %p166 = scmp.ne.s32.totalorder %s154, %s155
    %p167 = scmp.eq.s32.totalorder %s17, 3
    %p168 = por %p166, %p167
    %p170 = scmp.ne.s32.totalorder %s155, %s169
    %p171 = scmp.eq.s32.totalorder %s17, 0
    %p172 = por %p170, %p171
    %s173 = ssub.s32 %s18, %s30
    %s174 = ssub.s32 %s19, %s26
    %s175 = sor.u32 %s173, %s174
    %p176 = scmp.eq.s32.totalorder %s175, 0
    %s178 = sadd.s32 %s177, 1
    %s179 = scalar_select %p176, %s177, %s178
    %p182 = pneg %p176
    %p183 = scmp.eq.s32.totalorder %s11, 3
    %p184 = por %p182, %p183
    %p185 = scmp.ne.s32.totalorder %s177, %s180
    %p186 = scmp.eq.s32.totalorder %s11, 0
    %p187 = por %p185, %p186
    %p188 = scmp.ne.s32.totalorder %s177, %s180
    %p189 = scmp.eq.s32.totalorder %s16, 3
    %p190 = por %p188, %p189
    %p191 = scmp.ne.s32.totalorder %s180, %s181
    %p192 = scmp.eq.s32.totalorder %s16, 0
    %p193 = por %p191, %p192
    %p194 = scmp.ne.s32.totalorder %s180, %s181
    %p195 = scmp.eq.s32.totalorder %s17, 3
    %p196 = por %p194, %p195
    %p198 = scmp.ne.s32.totalorder %s181, %s197
    %p199 = scmp.eq.s32.totalorder %s17, 0
    %p200 = por %p198, %p199
    %p201 = scmp.le.s32.totalorder 1, %s11
    %p202 = scmp.lt.s32.totalorder %s11, 5
    %p203 = pnand %p201, %p202
    %p204 = pneg %p203
    // Predicated region
    $region9: #{tpu_custom_call.1} parent=5 // pred_check
      _
    $region10: #{tpu_custom_call.1} parent=5 // pred_check_branch
      %206 = sbr.rel (%p203) target = $region12
    $region11: #{tpu_custom_call.1} parent=5 // pred_region
      %s207 = ssub.s32 %s11, 1
      // Predicated region
      $region13: #{tpu_custom_call.1} parent=11 // pred_check
        %p208 = pneg %p144
      $region14: #{tpu_custom_call.1} parent=11 // pred_check_branch
        %210 = sbr.rel (%p208) target = $region16
      $region15: #{tpu_custom_call.1} parent=11 // pred_region
        _
      $region16: #{tpu_custom_call.1} parent=11 // pred_fallthru
        _
      // Predicated region
      $region17: #{tpu_custom_call.1} parent=11 // pred_check
        %p211 = pneg %p165
      $region18: #{tpu_custom_call.1} parent=11 // pred_check_branch
        %213 = sbr.rel (%p211) target = $region20
      $region19: #{tpu_custom_call.1} parent=11 // pred_region
        _
      $region20: #{tpu_custom_call.1} parent=11 // pred_fallthru
        _
    $region12: #{tpu_custom_call.1} parent=5 // pred_fallthru
      _
    %p214 = scmp.lt.s32.totalorder %s11, 4
    // Predicated region
    $region21: #{tpu_custom_call.1} parent=5 // pred_check
      %p215 = pneg %p214
    $region22: #{tpu_custom_call.1} parent=5 // pred_check_branch
      %217 = sbr.rel (%p215) target = $region24
    $region23: #{tpu_custom_call.1} parent=5 // pred_region
      // Predicated region
      $region25: #{tpu_custom_call.1} parent=23 // pred_check
        %p218 = pneg %p45
      $region26: #{tpu_custom_call.1} parent=23 // pred_check_branch
        %220 = sbr.rel (%p218) target = $region28
      $region27: #{tpu_custom_call.1} parent=23 // pred_region
        %s221 = smul.u32 8, %s19
        %p222 = scmp.lt.s32.totalorder %s18, 1
        %s223 = scalar_select %p222, %s18, 1
        %p224 = scmp.lt.s32.totalorder %s221, 15
        %s225 = scalar_select %p224, %s221, 15
        %s226 = smul.addr %s225, 3
        %s227 = smul.addr %s223, 48
        %s228 = sadd.s32 %s226, %s227
        %s229 = smul.addr %s228, 8
        %s230 = scalar_lea.vmem %s0, %s229
        %s231 = smul.u32 8, %s19
      $region28: #{tpu_custom_call.1} parent=23 // pred_fallthru
        _
      // Predicated region
      $region29: #{tpu_custom_call.1} parent=23 // pred_check
        %p232 = pneg %p81
      $region30: #{tpu_custom_call.1} parent=23 // pred_check_branch
        %234 = sbr.rel (%p232) target = $region32
      $region31: #{tpu_custom_call.1} parent=23 // pred_region
        %s235 = smul.u32 %s19, 8
        %s236 = ssub.s32 %s235, 1
        %p237 = scmp.gt.s32.totalorder %s236, 0
        %s238 = scalar_select %p237, %s236, 0
        %p239 = scmp.lt.s32.totalorder %s18, 1
        %s240 = scalar_select %p239, %s18, 1
        %p241 = scmp.lt.s32.totalorder %s238, 15
        %s242 = scalar_select %p241, %s238, 15
        %s243 = smul.addr %s242, 3
        %s244 = smul.addr %s240, 48
        %s245 = sadd.s32 %s243, %s244
        %s246 = smul.addr %s245, 8
        %s247 = scalar_lea.vmem %s1, %s246
        %s248 = smul.u32 %s19, 8
        %s249 = ssub.s32 %s248, 1
        %p250 = scmp.gt.s32.totalorder %s249, 0
        %s251 = scalar_select %p250, %s249, 0
      $region32: #{tpu_custom_call.1} parent=23 // pred_fallthru
        _
      // Predicated region
      $region33: #{tpu_custom_call.1} parent=23 // pred_check
        %p252 = pneg %p117
      $region34: #{tpu_custom_call.1} parent=23 // pred_check_branch
        %254 = sbr.rel (%p252) target = $region36
      $region35: #{tpu_custom_call.1} parent=23 // pred_region
        %s255 = smul.u32 %s19, 8
        %s256 = sadd.s32 %s255, 8
        %p257 = scmp.lt.s32.totalorder %s256, 15
        %s258 = scalar_select %p257, %s256, 15
        %p259 = scmp.lt.s32.totalorder %s18, 1
        %s260 = scalar_select %p259, %s18, 1
        %p261 = scmp.lt.s32.totalorder %s258, 15
        %s262 = scalar_select %p261, %s258, 15
        %s263 = smul.addr %s262, 3
        %s264 = smul.addr %s260, 48
        %s265 = sadd.s32 %s263, %s264
        %s266 = smul.addr %s265, 8
        %s267 = scalar_lea.vmem %s2, %s266
        %s268 = smul.u32 %s19, 8
        %s269 = sadd.s32 %s268, 8
        %p270 = scmp.lt.s32.totalorder %s269, 15
        %s271 = scalar_select %p270, %s269, 15
      $region36: #{tpu_custom_call.1} parent=23 // pred_fallthru
        _
    $region24: #{tpu_custom_call.1} parent=5 // pred_fallthru
      _
    %p272 = scmp.le.s32.totalorder 1, %s11
    %p273 = scmp.lt.s32.totalorder %s11, 5
    %p274 = pnand %p272, %p273
    %p275 = pneg %p274
    // Predicated region
    $region37: #{tpu_custom_call.1} parent=5 // pred_check
      _
    $region38: #{tpu_custom_call.1} parent=5 // pred_check_branch
      %277 = sbr.rel (%p274) target = $region40
    $region39: #{tpu_custom_call.1} parent=5 // pred_region
      %s278 = ssub.s32 %s11, 1
      %s279 = smul.u32 8, %s21
      %p280 = scmp.lt.s32.totalorder %s20, 1
      %s281 = scalar_select %p280, %s20, 1
      %p282 = scmp.lt.s32.totalorder %s279, 15
      %s283 = scalar_select %p282, %s279, 15
      %s284 = smul.addr %s283, 3
      %s285 = smul.addr %s281, 48
      %s286 = sadd.s32 %s284, %s285
      %s287 = smul.addr %s286, 8
      %s288 = scalar_lea.vmem %s0, %s287
      %p289 = pneg %p51
      %p290 = pneg %p48
      %s291 = smul.u32 %s21, 8
      %s292 = ssub.s32 %s291, 1
      %p293 = scmp.gt.s32.totalorder %s292, 0
      %s294 = scalar_select %p293, %s292, 0
      %p295 = scmp.lt.s32.totalorder %s20, 1
      %s296 = scalar_select %p295, %s20, 1
      %p297 = scmp.lt.s32.totalorder %s294, 15
      %s298 = scalar_select %p297, %s294, 15
      %s299 = smul.addr %s298, 3
      %s300 = smul.addr %s296, 48
      %s301 = sadd.s32 %s299, %s300
      %s302 = smul.addr %s301, 8
      %s303 = scalar_lea.vmem %s1, %s302
      %p304 = pneg %p87
      %p305 = pneg %p84
      %s306 = smul.u32 %s21, 8
      %s307 = sadd.s32 %s306, 8
      %p308 = scmp.lt.s32.totalorder %s307, 15
      %s309 = scalar_select %p308, %s307, 15
      %p310 = scmp.lt.s32.totalorder %s20, 1
      %s311 = scalar_select %p310, %s20, 1
      %p312 = scmp.lt.s32.totalorder %s309, 15
      %s313 = scalar_select %p312, %s309, 15
      %s314 = smul.addr %s313, 3
      %s315 = smul.addr %s311, 48
      %s316 = sadd.s32 %s314, %s315
      %s317 = smul.addr %s316, 8
      %s318 = scalar_lea.vmem %s2, %s317
      %p319 = pneg %p123
      %p320 = pneg %p120
      %p321 = pneg %p144
      %p322 = pneg %p141
      %p323 = pneg %p165
      %p324 = pneg %p162
      %p325 = pneg %p193
      %p326 = pneg %p190
      %s327 = smul.u32 8, %s21
      %p328 = scmp.lt.s32.totalorder %s20, 1
      %s329 = scalar_select %p328, %s20, 1
      %p330 = scmp.lt.s32.totalorder %s327, 15
      %s331 = scalar_select %p330, %s327, 15
      %s332 = smul.addr %s331, 3
      %s333 = smul.addr %s329, 48
      %s334 = sadd.s32 %s332, %s333
      %s335 = smul.addr %s334, 8
      %s336 = scalar_lea.vmem %s5, %s335
      %s337 = smul.u32 8, %s21
      %p338 = scmp.lt.s32.totalorder %s20, 1
      %s339 = scalar_select %p338, %s20, 1
      %p340 = scmp.lt.s32.totalorder %s337, 15
      %s341 = scalar_select %p340, %s337, 15
      %s342 = smul.addr %s341, 3
      %s343 = smul.addr %s339, 48
      %s344 = sadd.s32 %s342, %s343
      %s345 = smul.addr %s344, 8
      %s346 = scalar_lea.vmem %s0, %s345
      %s347 = smul.u32 8, %s21
      %s348 = smul.u32 %s21, 8
      %s349 = ssub.s32 %s348, 1
      %p350 = scmp.gt.s32.totalorder %s349, 0
      %s351 = scalar_select %p350, %s349, 0
      %p352 = scmp.lt.s32.totalorder %s20, 1
      %s353 = scalar_select %p352, %s20, 1
      %p354 = scmp.lt.s32.totalorder %s351, 15
      %s355 = scalar_select %p354, %s351, 15
      %s356 = smul.addr %s355, 3
      %s357 = smul.addr %s353, 48
      %s358 = sadd.s32 %s356, %s357
      %s359 = smul.addr %s358, 8
      %s360 = scalar_lea.vmem %s1, %s359
      %s361 = smul.u32 %s21, 8
      %s362 = ssub.s32 %s361, 1
      %p363 = scmp.gt.s32.totalorder %s362, 0
      %s364 = scalar_select %p363, %s362, 0
      %s365 = smul.u32 %s21, 8
      %s366 = sadd.s32 %s365, 8
      %p367 = scmp.lt.s32.totalorder %s366, 15
      %s368 = scalar_select %p367, %s366, 15
      %p369 = scmp.lt.s32.totalorder %s20, 1
      %s370 = scalar_select %p369, %s20, 1
      %p371 = scmp.lt.s32.totalorder %s368, 15
      %s372 = scalar_select %p371, %s368, 15
      %s373 = smul.addr %s372, 3
      %s374 = smul.addr %s370, 48
      %s375 = sadd.s32 %s373, %s374
      %s376 = smul.addr %s375, 8
      %s377 = scalar_lea.vmem %s2, %s376
      %s378 = smul.u32 %s21, 8
      %s379 = sadd.s32 %s378, 8
      %p380 = scmp.lt.s32.totalorder %s379, 15
      %s381 = scalar_select %p380, %s379, 15
      %s382 = smul.u32 8, %s21
      %p383 = scmp.lt.s32.totalorder %s20, 1
      %s384 = scalar_select %p383, %s20, 1
      %p385 = scmp.lt.s32.totalorder %s382, 15
      %s386 = scalar_select %p385, %s382, 15
      %s387 = smul.addr %s386, 3
      %s388 = smul.addr %s384, 48
      %s389 = sadd.s32 %s387, %s388
      %s390 = smul.addr %s389, 8
      %s391 = scalar_lea.vmem %s5, %s390
      %s392 = smul.u32 8, %s21
      %p393 = scmp.gt.s32.totalorder %s21, 0
      %v394 = vld [vmem:[%s360] sm:$0xff]
      %v395 = vld [vmem:[%s360 + $0x8] sm:$0xff]
      %v396 = vld [vmem:[%s360 + $0x10] sm:$0x3]
      %s397 = scalar_select %p393, 1, 0
      %v398 = vstv %s397
      %vm399 = vcmp.eq.s32.totalorder %v398, 1
      %v400 = vsel %vm399, %v394, 0.0
      %v401 = vsel %vm399, %v395, 0.0
      %v402 = vsel %vm399, %v396, 0.0
      %p403 = scmp.lt.s32.totalorder %s21, 1
      %v404 = vld [vmem:[%s377] sm:$0xff]
      %v405 = vld [vmem:[%s377 + $0x8] sm:$0xff]
      %v406 = vld [vmem:[%s377 + $0x10] sm:$0x3]
      %s407 = scalar_select %p403, 1, 0
      %v408 = vstv %s407
      %vm409 = vcmp.eq.s32.totalorder %v408, 1
      %v410 = vsel %vm409, %v404, 0.0
      %v411 = vsel %vm409, %v405, 0.0
      %v412 = vsel %vm409, %v406, 0.0
      %v413 = vld [vmem:[%s346] sm:$0xff]
      %v414 = vld [vmem:[%s346 + $0x8] sm:$0xff]
      %v415 = vld [vmem:[%s346 + $0x10] sm:$0x3]
      %v416 = vld [vmem:[%s346 + $0x18] sm:$0xff]
      %v417 = vld [vmem:[%s346 + $0x20] sm:$0xff]
      %v418 = vld [vmem:[%s346 + $0x28] sm:$0x3]
      %v419 = vld [vmem:[%s346 + $0x30] sm:$0xff]
      %v420 = vld [vmem:[%s346 + $0x38] sm:$0xff]
      %v421 = vld [vmem:[%s346 + $0x40] sm:$0x3]
      %v422 = vld [vmem:[%s346 + $0x48] sm:$0xff]
      %v423 = vld [vmem:[%s346 + $0x50] sm:$0xff]
      %v424 = vld [vmem:[%s346 + $0x58] sm:$0x3]
      %v425 = vld [vmem:[%s346 + $0x60] sm:$0xff]
      %v426 = vld [vmem:[%s346 + $0x68] sm:$0xff]
      %v427 = vld [vmem:[%s346 + $0x70] sm:$0x3]
      %v428 = vld [vmem:[%s346 + $0x78] sm:$0xff]
      %v429 = vld [vmem:[%s346 + $0x80] sm:$0xff]
      %v430 = vld [vmem:[%s346 + $0x88] sm:$0x3]
      %v431 = vld [vmem:[%s346 + $0x90] sm:$0xff]
      %v432 = vld [vmem:[%s346 + $0x98] sm:$0xff]
      %v433 = vld [vmem:[%s346 + $0xa0] sm:$0x3]
      %v434 = vld [vmem:[%s346 + $0xa8] sm:$0xff]
      %v435 = vld [vmem:[%s346 + $0xb0] sm:$0xff]
      %v436 = vld [vmem:[%s346 + $0xb8] sm:$0x3]
      %v437 = vld [vmem:[%s3] sm:$0x1]
      %439 = vset.pattern.permute.xlu0 0
      %440 = vperm.xlu0 %439, %v400
      %v441 = vpop.permute.xlu0 %440
      %444 = vset.pattern.permute.xlu0 0
      %445 = vperm.xlu0 %444, %v401
      %v446 = vpop.permute.xlu0 %445
      %449 = vset.pattern.permute.xlu0 0
      %450 = vperm.xlu0 %449, %v413
      %v451 = vpop.permute.xlu0 %450
      %454 = vset.pattern.permute.xlu0 0
      %455 = vperm.xlu0 %454, %v414
      %v456 = vpop.permute.xlu0 %455
      %459 = vset.pattern.permute.xlu0 0
      %460 = vperm.xlu0 %459, %v416
      %v461 = vpop.permute.xlu0 %460
      %464 = vset.pattern.permute.xlu0 0
      %465 = vperm.xlu0 %464, %v417
      %v466 = vpop.permute.xlu0 %465
      %469 = vset.pattern.permute.xlu0 0
      %470 = vperm.xlu0 %469, %v419
      %v471 = vpop.permute.xlu0 %470
      %474 = vset.pattern.permute.xlu0 0
      %475 = vperm.xlu0 %474, %v420
      %v476 = vpop.permute.xlu0 %475
      %479 = vset.pattern.permute.xlu0 0
      %480 = vperm.xlu0 %479, %v422
      %v481 = vpop.permute.xlu0 %480
      %484 = vset.pattern.permute.xlu0 0
      %485 = vperm.xlu0 %484, %v423
      %v486 = vpop.permute.xlu0 %485
      %489 = vset.pattern.permute.xlu0 0
      %490 = vperm.xlu0 %489, %v425
      %v491 = vpop.permute.xlu0 %490
      %494 = vset.pattern.permute.xlu0 0
      %495 = vperm.xlu0 %494, %v426
      %v496 = vpop.permute.xlu0 %495
      %499 = vset.pattern.permute.xlu0 0
      %500 = vperm.xlu0 %499, %v428
      %v501 = vpop.permute.xlu0 %500
      %504 = vset.pattern.permute.xlu0 0
      %505 = vperm.xlu0 %504, %v429
      %v506 = vpop.permute.xlu0 %505
      %509 = vset.pattern.permute.xlu0 0
      %510 = vperm.xlu0 %509, %v431
      %v511 = vpop.permute.xlu0 %510
      %514 = vset.pattern.permute.xlu0 0
      %515 = vperm.xlu0 %514, %v432
      %v516 = vpop.permute.xlu0 %515
      %v518 = vperm.slane %v437, 0
      %v519 = vmul.f32 %v441, %v518
      %v520 = vmul.f32 %v446, %v518
      %v521 = vmul.f32 %v451, %v518
      %v522 = vmul.f32 %v456, %v518
      %v523 = vmul.f32 %v461, %v518
      %v524 = vmul.f32 %v466, %v518
      %v525 = vmul.f32 %v471, %v518
      %v526 = vmul.f32 %v476, %v518
      %v527 = vmul.f32 %v481, %v518
      %v528 = vmul.f32 %v486, %v518
      %v529 = vmul.f32 %v491, %v518
      %v530 = vmul.f32 %v496, %v518
      %v531 = vmul.f32 %v501, %v518
      %v532 = vmul.f32 %v506, %v518
      %v533 = vmul.f32 %v511, %v518
      %v534 = vmul.f32 %v516, %v518
      %v535 = vadd.f32 %v519, 0.0
      %v536 = vadd.f32 %v520, 0.0
      %v537 = vadd.f32 %v521, 0.0
      %v538 = vadd.f32 %v522, 0.0
      %v539 = vadd.f32 %v523, 0.0
      %v540 = vadd.f32 %v524, 0.0
      %v541 = vadd.f32 %v525, 0.0
      %v542 = vadd.f32 %v526, 0.0
      %v543 = vadd.f32 %v527, 0.0
      %v544 = vadd.f32 %v528, 0.0
      %v545 = vadd.f32 %v529, 0.0
      %v546 = vadd.f32 %v530, 0.0
      %v547 = vadd.f32 %v531, 0.0
      %v548 = vadd.f32 %v532, 0.0
      %v549 = vadd.f32 %v533, 0.0
      %v550 = vadd.f32 %v534, 0.0
      %vm559 = vcmask 1046528
      %v560 = vrot.slane %v400, 1
      %v561 = vrot.slane %v401, 1
      %v562 = vsel %vm559, %v560, %v561
      %v563 = vrot.slane %v402, 1
      %v564 = vsel %vm559, %v561, %v563
      %v565 = vrot.slane %v413, 1
      %v566 = vrot.slane %v414, 1
      %v567 = vsel %vm559, %v565, %v566
      %v568 = vrot.slane %v415, 1
      %v569 = vsel %vm559, %v566, %v568
      %v570 = vrot.slane %v416, 1
      %v571 = vrot.slane %v417, 1
      %v572 = vsel %vm559, %v570, %v571
      %v573 = vrot.slane %v418, 1
      %v574 = vsel %vm559, %v571, %v573
      %v575 = vrot.slane %v419, 1
      %v576 = vrot.slane %v420, 1
      %v577 = vsel %vm559, %v575, %v576
      %v578 = vrot.slane %v421, 1
      %v579 = vsel %vm559, %v576, %v578
      %v580 = vrot.slane %v422, 1
      %v581 = vrot.slane %v423, 1
      %v582 = vsel %vm559, %v580, %v581
      %v583 = vrot.slane %v424, 1
      %v584 = vsel %vm559, %v581, %v583
      %v585 = vrot.slane %v425, 1
      %v586 = vrot.slane %v426, 1
      %v587 = vsel %vm559, %v585, %v586
      %v588 = vrot.slane %v427, 1
      %v589 = vsel %vm559, %v586, %v588
      %v590 = vrot.slane %v428, 1
      %v591 = vrot.slane %v429, 1
      %v592 = vsel %vm559, %v590, %v591
      %v593 = vrot.slane %v430, 1
      %v594 = vsel %vm559, %v591, %v593
      %v595 = vrot.slane %v431, 1
      %v596 = vrot.slane %v432, 1
      %v597 = vsel %vm559, %v595, %v596
      %v598 = vrot.slane %v433, 1
      %v599 = vsel %vm559, %v596, %v598
      %v600 = vld [vmem:[%s3 + $0x1] sm:$0x1]
      %601 = vset.pattern.permute.xlu0 0
      %602 = vperm.xlu0 %601, %v562
      %v603 = vpop.permute.xlu0 %602
      %605 = vset.pattern.permute.xlu0 0
      %606 = vperm.xlu0 %605, %v564
      %v607 = vpop.permute.xlu0 %606
      %609 = vset.pattern.permute.xlu0 0
      %610 = vperm.xlu0 %609, %v567
      %v611 = vpop.permute.xlu0 %610
      %613 = vset.pattern.permute.xlu0 0
      %614 = vperm.xlu0 %613, %v569
      %v615 = vpop.permute.xlu0 %614
      %617 = vset.pattern.permute.xlu0 0
      %618 = vperm.xlu0 %617, %v572
      %v619 = vpop.permute.xlu0 %618
      %621 = vset.pattern.permute.xlu0 0
      %622 = vperm.xlu0 %621, %v574
      %v623 = vpop.permute.xlu0 %622
      %625 = vset.pattern.permute.xlu0 0
      %626 = vperm.xlu0 %625, %v577
      %v627 = vpop.permute.xlu0 %626
      %629 = vset.pattern.permute.xlu0 0
      %630 = vperm.xlu0 %629, %v579
      %v631 = vpop.permute.xlu0 %630
      %633 = vset.pattern.permute.xlu0 0
      %634 = vperm.xlu0 %633, %v582
      %v635 = vpop.permute.xlu0 %634
      %637 = vset.pattern.permute.xlu0 0
      %638 = vperm.xlu0 %637, %v584
      %v639 = vpop.permute.xlu0 %638
      %641 = vset.pattern.permute.xlu0 0
      %642 = vperm.xlu0 %641, %v587
      %v643 = vpop.permute.xlu0 %642
      %645 = vset.pattern.permute.xlu0 0
      %646 = vperm.xlu0 %645, %v589
      %v647 = vpop.permute.xlu0 %646
      %649 = vset.pattern.permute.xlu0 0
      %650 = vperm.xlu0 %649, %v592
      %v651 = vpop.permute.xlu0 %650
      %653 = vset.pattern.permute.xlu0 0
      %654 = vperm.xlu0 %653, %v594
      %v655 = vpop.permute.xlu0 %654
      %657 = vset.pattern.permute.xlu0 0
      %658 = vperm.xlu0 %657, %v597
      %v659 = vpop.permute.xlu0 %658
      %661 = vset.pattern.permute.xlu0 0
      %662 = vperm.xlu0 %661, %v599
      %v663 = vpop.permute.xlu0 %662
      %v665 = vperm.slane %v600, 0
      %v666 = vmul.f32 %v603, %v665
      %v667 = vmul.f32 %v607, %v665
      %v668 = vmul.f32 %v611, %v665
      %v669 = vmul.f32 %v615, %v665
      %v670 = vmul.f32 %v619, %v665
      %v671 = vmul.f32 %v623, %v665
      %v672 = vmul.f32 %v627, %v665
      %v673 = vmul.f32 %v631, %v665
      %v674 = vmul.f32 %v635, %v665
      %v675 = vmul.f32 %v639, %v665
      %v676 = vmul.f32 %v643, %v665
      %v677 = vmul.f32 %v647, %v665
      %v678 = vmul.f32 %v651, %v665
      %v679 = vmul.f32 %v655, %v665
      %v680 = vmul.f32 %v659, %v665
      %v681 = vmul.f32 %v663, %v665
      %v682 = vadd.f32 %v535, %v666
      %v683 = vadd.f32 %v536, %v667
      %v684 = vadd.f32 %v537, %v668
      %v685 = vadd.f32 %v538, %v669
      %v686 = vadd.f32 %v539, %v670
      %v687 = vadd.f32 %v540, %v671
      %v688 = vadd.f32 %v541, %v672
      %v689 = vadd.f32 %v542, %v673
      %v690 = vadd.f32 %v543, %v674
      %v691 = vadd.f32 %v544, %v675
      %v692 = vadd.f32 %v545, %v676
      %v693 = vadd.f32 %v546, %v677
      %v694 = vadd.f32 %v547, %v678
      %v695 = vadd.f32 %v548, %v679
      %v696 = vadd.f32 %v549, %v680
      %v697 = vadd.f32 %v550, %v681
      %vm698 = vcmask 1045504
      %v699 = vrot.slane %v400, 2
      %v700 = vrot.slane %v401, 2
      %v701 = vsel %vm698, %v699, %v700
      %v702 = vrot.slane %v402, 2
      %v703 = vsel %vm698, %v700, %v702
      %v704 = vrot.slane %v413, 2
      %v705 = vrot.slane %v414, 2
      %v706 = vsel %vm698, %v704, %v705
      %v707 = vrot.slane %v415, 2
      %v708 = vsel %vm698, %v705, %v707
      %v709 = vrot.slane %v416, 2
      %v710 = vrot.slane %v417, 2
      %v711 = vsel %vm698, %v709, %v710
      %v712 = vrot.slane %v418, 2
      %v713 = vsel %vm698, %v710, %v712
      %v714 = vrot.slane %v419, 2
      %v715 = vrot.slane %v420, 2
      %v716 = vsel %vm698, %v714, %v715
      %v717 = vrot.slane %v421, 2
      %v718 = vsel %vm698, %v715, %v717
      %v719 = vrot.slane %v422, 2
      %v720 = vrot.slane %v423, 2
      %v721 = vsel %vm698, %v719, %v720
      %v722 = vrot.slane %v424, 2
      %v723 = vsel %vm698, %v720, %v722
      %v724 = vrot.slane %v425, 2
      %v725 = vrot.slane %v426, 2
      %v726 = vsel %vm698, %v724, %v725
      %v727 = vrot.slane %v427, 2
      %v728 = vsel %vm698, %v725, %v727
      %v729 = vrot.slane %v428, 2
      %v730 = vrot.slane %v429, 2
      %v731 = vsel %vm698, %v729, %v730
      %v732 = vrot.slane %v430, 2
      %v733 = vsel %vm698, %v730, %v732
      %v734 = vrot.slane %v431, 2
      %v735 = vrot.slane %v432, 2
      %v736 = vsel %vm698, %v734, %v735
      %v737 = vrot.slane %v433, 2
      %v738 = vsel %vm698, %v735, %v737
      %v739 = vld [vmem:[%s3 + $0x2] sm:$0x1]
      %740 = vset.pattern.permute.xlu0 0
      %741 = vperm.xlu0 %740, %v701
      %v742 = vpop.permute.xlu0 %741
      %744 = vset.pattern.permute.xlu0 0
      %745 = vperm.xlu0 %744, %v703
      %v746 = vpop.permute.xlu0 %745
      %748 = vset.pattern.permute.xlu0 0
      %749 = vperm.xlu0 %748, %v706
      %v750 = vpop.permute.xlu0 %749
      %752 = vset.pattern.permute.xlu0 0
      %753 = vperm.xlu0 %752, %v708
      %v754 = vpop.permute.xlu0 %753
      %756 = vset.pattern.permute.xlu0 0
      %757 = vperm.xlu0 %756, %v711
      %v758 = vpop.permute.xlu0 %757
      %760 = vset.pattern.permute.xlu0 0
      %761 = vperm.xlu0 %760, %v713
      %v762 = vpop.permute.xlu0 %761
      %764 = vset.pattern.permute.xlu0 0
      %765 = vperm.xlu0 %764, %v716
      %v766 = vpop.permute.xlu0 %765
      %768 = vset.pattern.permute.xlu0 0
      %769 = vperm.xlu0 %768, %v718
      %v770 = vpop.permute.xlu0 %769
      %772 = vset.pattern.permute.xlu0 0
      %773 = vperm.xlu0 %772, %v721
      %v774 = vpop.permute.xlu0 %773
      %776 = vset.pattern.permute.xlu0 0
      %777 = vperm.xlu0 %776, %v723
      %v778 = vpop.permute.xlu0 %777
      %780 = vset.pattern.permute.xlu0 0
      %781 = vperm.xlu0 %780, %v726
      %v782 = vpop.permute.xlu0 %781
      %784 = vset.pattern.permute.xlu0 0
      %785 = vperm.xlu0 %784, %v728
      %v786 = vpop.permute.xlu0 %785
      %788 = vset.pattern.permute.xlu0 0
      %789 = vperm.xlu0 %788, %v731
      %v790 = vpop.permute.xlu0 %789
      %792 = vset.pattern.permute.xlu0 0
      %793 = vperm.xlu0 %792, %v733
      %v794 = vpop.permute.xlu0 %793
      %796 = vset.pattern.permute.xlu0 0
      %797 = vperm.xlu0 %796, %v736
      %v798 = vpop.permute.xlu0 %797
      %800 = vset.pattern.permute.xlu0 0
      %801 = vperm.xlu0 %800, %v738
      %v802 = vpop.permute.xlu0 %801
      %v804 = vperm.slane %v739, 0
      %v805 = vmul.f32 %v742, %v804
      %v806 = vmul.f32 %v746, %v804
      %v807 = vmul.f32 %v750, %v804
      %v808 = vmul.f32 %v754, %v804
      %v809 = vmul.f32 %v758, %v804
      %v810 = vmul.f32 %v762, %v804
      %v811 = vmul.f32 %v766, %v804
      %v812 = vmul.f32 %v770, %v804
      %v813 = vmul.f32 %v774, %v804
      %v814 = vmul.f32 %v778, %v804
      %v815 = vmul.f32 %v782, %v804
      %v816 = vmul.f32 %v786, %v804
      %v817 = vmul.f32 %v790, %v804
      %v818 = vmul.f32 %v794, %v804
      %v819 = vmul.f32 %v798, %v804
      %v820 = vmul.f32 %v802, %v804
      %v821 = vadd.f32 %v682, %v805
      %v822 = vadd.f32 %v683, %v806
      %v823 = vadd.f32 %v684, %v807
      %v824 = vadd.f32 %v685, %v808
      %v825 = vadd.f32 %v686, %v809
      %v826 = vadd.f32 %v687, %v810
      %v827 = vadd.f32 %v688, %v811
      %v828 = vadd.f32 %v689, %v812
      %v829 = vadd.f32 %v690, %v813
      %v830 = vadd.f32 %v691, %v814
      %v831 = vadd.f32 %v692, %v815
      %v832 = vadd.f32 %v693, %v816
      %v833 = vadd.f32 %v694, %v817
      %v834 = vadd.f32 %v695, %v818
      %v835 = vadd.f32 %v696, %v819
      %v836 = vadd.f32 %v697, %v820
      %s837 = scalar_lea.vmem %s3, 4
      %v838 = vld [vmem:[%s837] sm:$0x1]
      %840 = vset.pattern.permute.xlu0 0
      %841 = vperm.xlu0 %840, %v434
      %v842 = vpop.permute.xlu0 %841
      %845 = vset.pattern.permute.xlu0 0
      %846 = vperm.xlu0 %845, %v435
      %v847 = vpop.permute.xlu0 %846
      %v849 = vperm.slane %v838, 0
      %v850 = vmul.f32 %v451, %v849
      %v851 = vmul.f32 %v456, %v849
      %v852 = vmul.f32 %v461, %v849
      %v853 = vmul.f32 %v466, %v849
      %v854 = vmul.f32 %v471, %v849
      %v855 = vmul.f32 %v476, %v849
      %v856 = vmul.f32 %v481, %v849
      %v857 = vmul.f32 %v486, %v849
      %v858 = vmul.f32 %v491, %v849
      %v859 = vmul.f32 %v496, %v849
      %v860 = vmul.f32 %v501, %v849
      %v861 = vmul.f32 %v506, %v849
      %v862 = vmul.f32 %v511, %v849
      %v863 = vmul.f32 %v516, %v849
      %v864 = vmul.f32 %v842, %v849
      %v865 = vmul.f32 %v847, %v849
      %v866 = vadd.f32 %v821, %v850
      %v867 = vadd.f32 %v822, %v851
      %v868 = vadd.f32 %v823, %v852
      %v869 = vadd.f32 %v824, %v853
      %v870 = vadd.f32 %v825, %v854
      %v871 = vadd.f32 %v826, %v855
      %v872 = vadd.f32 %v827, %v856
      %v873 = vadd.f32 %v828, %v857
      %v874 = vadd.f32 %v829, %v858
      %v875 = vadd.f32 %v830, %v859
      %v876 = vadd.f32 %v831, %v860
      %v877 = vadd.f32 %v832, %v861
      %v878 = vadd.f32 %v833, %v862
      %v879 = vadd.f32 %v834, %v863
      %v880 = vadd.f32 %v835, %v864
      %v881 = vadd.f32 %v836, %v865
      %v883 = vrot.slane %v434, 1
      %v884 = vrot.slane %v435, 1
      %v885 = vsel %vm559, %v883, %v884
      %v886 = vrot.slane %v436, 1
      %v887 = vsel %vm559, %v884, %v886
      %v888 = vld [vmem:[%s837 + $0x1] sm:$0x1]
      %889 = vset.pattern.permute.xlu0 0
      %890 = vperm.xlu0 %889, %v885
      %v891 = vpop.permute.xlu0 %890
      %893 = vset.pattern.permute.xlu0 0
      %894 = vperm.xlu0 %893, %v887
      %v895 = vpop.permute.xlu0 %894
      %v897 = vperm.slane %v888, 0
      %v898 = vmul.f32 %v611, %v897
      %v899 = vmul.f32 %v615, %v897
      %v900 = vmul.f32 %v619, %v897
      %v901 = vmul.f32 %v623, %v897
      %v902 = vmul.f32 %v627, %v897
      %v903 = vmul.f32 %v631, %v897
      %v904 = vmul.f32 %v635, %v897
      %v905 = vmul.f32 %v639, %v897
      %v906 = vmul.f32 %v643, %v897
      %v907 = vmul.f32 %v647, %v897
      %v908 = vmul.f32 %v651, %v897
      %v909 = vmul.f32 %v655, %v897
      %v910 = vmul.f32 %v659, %v897
      %v911 = vmul.f32 %v663, %v897
      %v912 = vmul.f32 %v891, %v897
      %v913 = vmul.f32 %v895, %v897
      %v914 = vadd.f32 %v866, %v898
      %v915 = vadd.f32 %v867, %v899
      %v916 = vadd.f32 %v868, %v900
      %v917 = vadd.f32 %v869, %v901
      %v918 = vadd.f32 %v870, %v902
      %v919 = vadd.f32 %v871, %v903
      %v920 = vadd.f32 %v872, %v904
      %v921 = vadd.f32 %v873, %v905
      %v922 = vadd.f32 %v874, %v906
      %v923 = vadd.f32 %v875, %v907
      %v924 = vadd.f32 %v876, %v908
      %v925 = vadd.f32 %v877, %v909
      %v926 = vadd.f32 %v878, %v910
      %v927 = vadd.f32 %v879, %v911
      %v928 = vadd.f32 %v880, %v912
      %v929 = vadd.f32 %v881, %v913
      %v930 = vrot.slane %v434, 2
      %v931 = vrot.slane %v435, 2
      %v932 = vsel %vm698, %v930, %v931
      %v933 = vrot.slane %v436, 2
      %v934 = vsel %vm698, %v931, %v933
      %v935 = vld [vmem:[%s837 + $0x2] sm:$0x1]
      %936 = vset.pattern.permute.xlu0 0
      %937 = vperm.xlu0 %936, %v932
      %v938 = vpop.permute.xlu0 %937
      %940 = vset.pattern.permute.xlu0 0
      %941 = vperm.xlu0 %940, %v934
      %v942 = vpop.permute.xlu0 %941
      %v944 = vperm.slane %v935, 0
      %v945 = vmul.f32 %v750, %v944
      %v946 = vmul.f32 %v754, %v944
      %v947 = vmul.f32 %v758, %v944
      %v948 = vmul.f32 %v762, %v944
      %v949 = vmul.f32 %v766, %v944
      %v950 = vmul.f32 %v770, %v944
      %v951 = vmul.f32 %v774, %v944
      %v952 = vmul.f32 %v778, %v944
      %v953 = vmul.f32 %v782, %v944
      %v954 = vmul.f32 %v786, %v944
      %v955 = vmul.f32 %v790, %v944
      %v956 = vmul.f32 %v794, %v944
      %v957 = vmul.f32 %v798, %v944
      %v958 = vmul.f32 %v802, %v944
      %v959 = vmul.f32 %v938, %v944
      %v960 = vmul.f32 %v942, %v944
      %v961 = vadd.f32 %v914, %v945
      %v962 = vadd.f32 %v915, %v946
      %v963 = vadd.f32 %v916, %v947
      %v964 = vadd.f32 %v917, %v948
      %v965 = vadd.f32 %v918, %v949
      %v966 = vadd.f32 %v919, %v950
      %v967 = vadd.f32 %v920, %v951
      %v968 = vadd.f32 %v921, %v952
      %v969 = vadd.f32 %v922, %v953
      %v970 = vadd.f32 %v923, %v954
      %v971 = vadd.f32 %v924, %v955
      %v972 = vadd.f32 %v925, %v956
      %v973 = vadd.f32 %v926, %v957
      %v974 = vadd.f32 %v927, %v958
      %v975 = vadd.f32 %v928, %v959
      %v976 = vadd.f32 %v929, %v960
      %s977 = scalar_lea.vmem %s3, 8
      %v978 = vld [vmem:[%s977] sm:$0x1]
      %980 = vset.pattern.permute.xlu0 0
      %981 = vperm.xlu0 %980, %v410
      %v982 = vpop.permute.xlu0 %981
      %985 = vset.pattern.permute.xlu0 0
      %986 = vperm.xlu0 %985, %v411
      %v987 = vpop.permute.xlu0 %986
      %v989 = vperm.slane %v978, 0
      %v990 = vmul.f32 %v461, %v989
      %v991 = vmul.f32 %v466, %v989
      %v992 = vmul.f32 %v471, %v989
      %v993 = vmul.f32 %v476, %v989
      %v994 = vmul.f32 %v481, %v989
      %v995 = vmul.f32 %v486, %v989
      %v996 = vmul.f32 %v491, %v989
      %v997 = vmul.f32 %v496, %v989
      %v998 = vmul.f32 %v501, %v989
      %v999 = vmul.f32 %v506, %v989
      %v1000 = vmul.f32 %v511, %v989
      %v1001 = vmul.f32 %v516, %v989
      %v1002 = vmul.f32 %v842, %v989
      %v1003 = vmul.f32 %v847, %v989
      %v1004 = vmul.f32 %v982, %v989
      %v1005 = vmul.f32 %v987, %v989
      %v1006 = vadd.f32 %v961, %v990
      %v1007 = vadd.f32 %v962, %v991
      %v1008 = vadd.f32 %v963, %v992
      %v1009 = vadd.f32 %v964, %v993
      %v1010 = vadd.f32 %v965, %v994
      %v1011 = vadd.f32 %v966, %v995
      %v1012 = vadd.f32 %v967, %v996
      %v1013 = vadd.f32 %v968, %v997
      %v1014 = vadd.f32 %v969, %v998
      %v1015 = vadd.f32 %v970, %v999
      %v1016 = vadd.f32 %v971, %v1000
      %v1017 = vadd.f32 %v972, %v1001
      %v1018 = vadd.f32 %v973, %v1002
      %v1019 = vadd.f32 %v974, %v1003
      %v1020 = vadd.f32 %v975, %v1004
      %v1021 = vadd.f32 %v976, %v1005
      %v1023 = vrot.slane %v410, 1
      %v1024 = vrot.slane %v411, 1
      %v1025 = vsel %vm559, %v1023, %v1024
      %v1026 = vrot.slane %v412, 1
      %v1027 = vsel %vm559, %v1024, %v1026
      %v1028 = vld [vmem:[%s977 + $0x1] sm:$0x1]
      %1029 = vset.pattern.permute.xlu0 0
      %1030 = vperm.xlu0 %1029, %v1025
      %v1031 = vpop.permute.xlu0 %1030
      %1033 = vset.pattern.permute.xlu0 0
      %1034 = vperm.xlu0 %1033, %v1027
      %v1035 = vpop.permute.xlu0 %1034
      %v1037 = vperm.slane %v1028, 0
      %v1038 = vmul.f32 %v619, %v1037
      %v1039 = vmul.f32 %v623, %v1037
      %v1040 = vmul.f32 %v627, %v1037
      %v1041 = vmul.f32 %v631, %v1037
      %v1042 = vmul.f32 %v635, %v1037
      %v1043 = vmul.f32 %v639, %v1037
      %v1044 = vmul.f32 %v643, %v1037
      %v1045 = vmul.f32 %v647, %v1037
      %v1046 = vmul.f32 %v651, %v1037
      %v1047 = vmul.f32 %v655, %v1037
      %v1048 = vmul.f32 %v659, %v1037
      %v1049 = vmul.f32 %v663, %v1037
      %v1050 = vmul.f32 %v891, %v1037
      %v1051 = vmul.f32 %v895, %v1037
      %v1052 = vmul.f32 %v1031, %v1037
      %v1053 = vmul.f32 %v1035, %v1037
      %v1054 = vadd.f32 %v1006, %v1038
      %v1055 = vadd.f32 %v1007, %v1039
      %v1056 = vadd.f32 %v1008, %v1040
      %v1057 = vadd.f32 %v1009, %v1041
      %v1058 = vadd.f32 %v1010, %v1042
      %v1059 = vadd.f32 %v1011, %v1043
      %v1060 = vadd.f32 %v1012, %v1044
      %v1061 = vadd.f32 %v1013, %v1045
      %v1062 = vadd.f32 %v1014, %v1046
      %v1063 = vadd.f32 %v1015, %v1047
      %v1064 = vadd.f32 %v1016, %v1048
      %v1065 = vadd.f32 %v1017, %v1049
      %v1066 = vadd.f32 %v1018, %v1050
      %v1067 = vadd.f32 %v1019, %v1051
      %v1068 = vadd.f32 %v1020, %v1052
      %v1069 = vadd.f32 %v1021, %v1053
      %v1070 = vrot.slane %v410, 2
      %v1071 = vrot.slane %v411, 2
      %v1072 = vsel %vm698, %v1070, %v1071
      %v1073 = vrot.slane %v412, 2
      %v1074 = vsel %vm698, %v1071, %v1073
      %v1075 = vld [vmem:[%s977 + $0x2] sm:$0x1]
      %1076 = vset.pattern.permute.xlu0 0
      %1077 = vperm.xlu0 %1076, %v1072
      %v1078 = vpop.permute.xlu0 %1077
      %1080 = vset.pattern.permute.xlu0 0
      %1081 = vperm.xlu0 %1080, %v1074
      %v1082 = vpop.permute.xlu0 %1081
      %v1084 = vperm.slane %v1075, 0
      %v1085 = vmul.f32 %v758, %v1084
      %v1086 = vmul.f32 %v762, %v1084
      %v1087 = vmul.f32 %v766, %v1084
      %v1088 = vmul.f32 %v770, %v1084
      %v1089 = vmul.f32 %v774, %v1084
      %v1090 = vmul.f32 %v778, %v1084
      %v1091 = vmul.f32 %v782, %v1084
      %v1092 = vmul.f32 %v786, %v1084
      %v1093 = vmul.f32 %v790, %v1084
      %v1094 = vmul.f32 %v794, %v1084
      %v1095 = vmul.f32 %v798, %v1084
      %v1096 = vmul.f32 %v802, %v1084
      %v1097 = vmul.f32 %v938, %v1084
      %v1098 = vmul.f32 %v942, %v1084
      %v1099 = vmul.f32 %v1078, %v1084
      %v1100 = vmul.f32 %v1082, %v1084
      %v1101 = vadd.f32 %v1054, %v1085
      %v1102 = vadd.f32 %v1055, %v1086
      %v1103 = vadd.f32 %v1056, %v1087
      %v1104 = vadd.f32 %v1057, %v1088
      %v1105 = vadd.f32 %v1058, %v1089
      %v1106 = vadd.f32 %v1059, %v1090
      %v1107 = vadd.f32 %v1060, %v1091
      %v1108 = vadd.f32 %v1061, %v1092
      %v1109 = vadd.f32 %v1062, %v1093
      %v1110 = vadd.f32 %v1063, %v1094
      %v1111 = vadd.f32 %v1064, %v1095
      %v1112 = vadd.f32 %v1065, %v1096
      %v1113 = vadd.f32 %v1066, %v1097
      %v1114 = vadd.f32 %v1067, %v1098
      %v1115 = vadd.f32 %v1068, %v1099
      %v1116 = vadd.f32 %v1069, %v1100
      %v1117 = vld [vmem:[%s4] sm:$0x1]
      %v1119 = vperm.slane %v1117, 0
      %v1121 = vadd.f32 %v1101, %v1119
      %v1122 = vadd.f32 %v1102, %v1119
      %v1123 = vadd.f32 %v1103, %v1119
      %v1124 = vadd.f32 %v1104, %v1119
      %v1125 = vadd.f32 %v1105, %v1119
      %v1126 = vadd.f32 %v1106, %v1119
      %v1127 = vadd.f32 %v1107, %v1119
      %v1128 = vadd.f32 %v1108, %v1119
      %v1129 = vadd.f32 %v1109, %v1119
      %v1130 = vadd.f32 %v1110, %v1119
      %v1131 = vadd.f32 %v1111, %v1119
      %v1132 = vadd.f32 %v1112, %v1119
      %v1133 = vadd.f32 %v1113, %v1119
      %v1134 = vadd.f32 %v1114, %v1119
      %v1135 = vadd.f32 %v1115, %v1119
      %v1136 = vadd.f32 %v1116, %v1119
      %v1137 = vmax.f32 %v1121, 0.0
      %v1138 = vmax.f32 %v1122, 0.0
      %v1139 = vmax.f32 %v1123, 0.0
      %v1140 = vmax.f32 %v1124, 0.0
      %v1141 = vmax.f32 %v1125, 0.0
      %v1142 = vmax.f32 %v1126, 0.0
      %v1143 = vmax.f32 %v1127, 0.0
      %v1144 = vmax.f32 %v1128, 0.0
      %v1145 = vmax.f32 %v1129, 0.0
      %v1146 = vmax.f32 %v1130, 0.0
      %v1147 = vmax.f32 %v1131, 0.0
      %v1148 = vmax.f32 %v1132, 0.0
      %v1149 = vmax.f32 %v1133, 0.0
      %v1150 = vmax.f32 %v1134, 0.0
      %v1151 = vmax.f32 %v1135, 0.0
      %v1152 = vmax.f32 %v1136, 0.0
      %vm1153 = vcmask 516096
      %1154 = vst.msk [vmem:[%s391] sm:$0x1] %vm1153, 0.0
      %1155 = vst.msk [vmem:[%s391 + $0x18] sm:$0x1] %vm1153, 0.0
      %1156 = vst.msk [vmem:[%s391 + $0x30] sm:$0x1] %vm1153, 0.0
      %1157 = vst.msk [vmem:[%s391 + $0x48] sm:$0x1] %vm1153, 0.0
      %1158 = vst.msk [vmem:[%s391 + $0x60] sm:$0x1] %vm1153, 0.0
      %1159 = vst.msk [vmem:[%s391 + $0x78] sm:$0x1] %vm1153, 0.0
      %1160 = vst.msk [vmem:[%s391 + $0x90] sm:$0x1] %vm1153, 0.0
      %1161 = vst.msk [vmem:[%s391 + $0xa8] sm:$0x1] %vm1153, 0.0
      %1162 = vst.msk [vmem:[%s391 + $0x11] sm:$0x1] %vm1153, 0.0
      %1163 = vst.msk [vmem:[%s391 + $0x29] sm:$0x1] %vm1153, 0.0
      %1164 = vst.msk [vmem:[%s391 + $0x41] sm:$0x1] %vm1153, 0.0
      %1165 = vst.msk [vmem:[%s391 + $0x59] sm:$0x1] %vm1153, 0.0
      %1166 = vst.msk [vmem:[%s391 + $0x71] sm:$0x1] %vm1153, 0.0
      %1167 = vst.msk [vmem:[%s391 + $0x89] sm:$0x1] %vm1153, 0.0
      %1168 = vst.msk [vmem:[%s391 + $0xa1] sm:$0x1] %vm1153, 0.0
      %1169 = vst.msk [vmem:[%s391 + $0xb9] sm:$0x1] %vm1153, 0.0
      %vm1170 = vcmask 523264
      %1171 = vst.msk [vmem:[%s391 + $0x1] sm:$0xff] %vm1170, %v1137
      %1172 = vst.msk [vmem:[%s391 + $0x9] sm:$0xff] %vm1170, %v1138
      %1173 = vst.msk [vmem:[%s391 + $0x19] sm:$0xff] %vm1170, %v1139
      %1174 = vst.msk [vmem:[%s391 + $0x21] sm:$0xff] %vm1170, %v1140
      %1175 = vst.msk [vmem:[%s391 + $0x31] sm:$0xff] %vm1170, %v1141
      %1176 = vst.msk [vmem:[%s391 + $0x39] sm:$0xff] %vm1170, %v1142
      %1177 = vst.msk [vmem:[%s391 + $0x49] sm:$0xff] %vm1170, %v1143
      %1178 = vst.msk [vmem:[%s391 + $0x51] sm:$0xff] %vm1170, %v1144
      %1179 = vst.msk [vmem:[%s391 + $0x61] sm:$0xff] %vm1170, %v1145
      %1180 = vst.msk [vmem:[%s391 + $0x69] sm:$0xff] %vm1170, %v1146
      %1181 = vst.msk [vmem:[%s391 + $0x79] sm:$0xff] %vm1170, %v1147
      %1182 = vst.msk [vmem:[%s391 + $0x81] sm:$0xff] %vm1170, %v1148
      %1183 = vst.msk [vmem:[%s391 + $0x91] sm:$0xff] %vm1170, %v1149
      %1184 = vst.msk [vmem:[%s391 + $0x99] sm:$0xff] %vm1170, %v1150
      %1185 = vst.msk [vmem:[%s391 + $0xa9] sm:$0xff] %vm1170, %v1151
      %1186 = vst.msk [vmem:[%s391 + $0xb1] sm:$0xff] %vm1170, %v1152
      %s1187 = smul.u32 8, %s21
      %p1188 = scmp.lt.s32.totalorder %s20, 1
      %s1189 = scalar_select %p1188, %s20, 1
      %p1190 = scmp.lt.s32.totalorder %s1187, 15
      %s1191 = scalar_select %p1190, %s1187, 15
      %s1192 = smul.addr %s1191, 3
      %s1193 = smul.addr %s1189, 48
      %s1194 = sadd.s32 %s1192, %s1193
      %s1195 = smul.addr %s1194, 8
      %s1196 = scalar_lea.vmem %s5, %s1195
      // Predicated region
      $region41: #{tpu_custom_call.1} parent=39 // pred_check
        %p1197 = pneg %p190
      $region42: #{tpu_custom_call.1} parent=39 // pred_check_branch
        %1199 = sbr.rel (%p1197) target = $region44
      $region43: #{tpu_custom_call.1} parent=39 // pred_region
        %s1200 = smul.u32 8, %s21
      $region44: #{tpu_custom_call.1} parent=39 // pred_fallthru
        _
    $region40: #{tpu_custom_call.1} parent=5 // pred_fallthru
      _
    %p1201 = scmp.le.s32.totalorder 2, %s11
    // Predicated region
    $region45: #{tpu_custom_call.1} parent=5 // pred_check
      %p1202 = pneg %p1201
    $region46: #{tpu_custom_call.1} parent=5 // pred_check_branch
      %1204 = sbr.rel (%p1202) target = $region48
    $region47: #{tpu_custom_call.1} parent=5 // pred_region
      %s1205 = ssub.s32 %s11, 2
      // Predicated region
      $region49: #{tpu_custom_call.1} parent=47 // pred_check
        %p1206 = pneg %p196
      $region50: #{tpu_custom_call.1} parent=47 // pred_check_branch
        %1208 = sbr.rel (%p1206) target = $region52
      $region51: #{tpu_custom_call.1} parent=47 // pred_region
        %s1209 = smul.u32 8, %s23
        %p1210 = scmp.lt.s32.totalorder %s22, 1
        %s1211 = scalar_select %p1210, %s22, 1
        %p1212 = scmp.lt.s32.totalorder %s1209, 15
        %s1213 = scalar_select %p1212, %s1209, 15
        %s1214 = smul.addr %s1213, 3
        %s1215 = smul.addr %s1211, 48
        %s1216 = sadd.s32 %s1214, %s1215
        %s1217 = smul.addr %s1216, 8
        %s1218 = scalar_lea.vmem %s5, %s1217
      $region52: #{tpu_custom_call.1} parent=47 // pred_fallthru
        _
    $region48: #{tpu_custom_call.1} parent=5 // pred_fallthru
      _
  $region6: #{tpu_custom_call.1} parent=0 // loop_footer
    %s15 = sadd.s32 1, %s11
  $region7: #{tpu_custom_call.1} parent=0 // loop_footer_branch
    %10 = sbr.rel target = $region3
  $region8: #{tpu_custom_call.1} parent=0 // loop_exit
    _

</llo_original>
